<compile_context>
chip_gen: v6e
topology: v6e:2x2x1
jax: 0.10.0
libtpu: 0.0.40
codegen_flags: <defaults>
</compile_context>

<pallas_src>
import jax
import jax.numpy as jnp
from jax.experimental import pallas as pl
from jax.experimental.pallas import tpu as pltpu


# ----------------------------------------------------------------------------
# input_proj: 1x1 Conv2d, computed directly in NCHW layout.
#   out[b] = W (Cout,Cin) @ src[b] (Cin, Hs*Ws) + bias
# ----------------------------------------------------------------------------
def _conv1x1_kernel(x_ref, w_ref, b_ref, o_ref):
    # x_ref: (1, Cin, ts), w_ref: (Cout, Cin), b_ref: (Cout, 1)
    y = jnp.dot(w_ref[...], x_ref[0], preferred_element_type=jnp.float32)
    o_ref[0] = (y + b_ref[...]).astype(o_ref.dtype)


def _spatial_tile(hw, cin, cout, itemsize, budget=24 * 1024 * 1024):
    """Largest lane-dense (multiple-of-128) spatial tile whose double-buffered
    in+out tile footprint PLUS the double-buffered weight/bias stays under
    `budget` (safe vs. v7x's 64 MiB physical VMEM; conservative on v5e/v6e)."""
    if hw <= 128:
        return hw                                  # full extent is always legal
    wbytes = 2 * (cout * cin + cout) * itemsize    # double-buffered W + bias
    best = 128
    upper = pl.cdiv(hw, 128) * 128
    for t in (128, 256, 512, 1024, 2048):
        if t <= upper and 2 * (cin + cout) * t * itemsize + wbytes <= budget:
            best = t
    return best


def input_proj_conv1x1(src_nchw, w_oc_ic, b):
    B, Cin, Hs, Ws = src_nchw.shape
    Cout = w_oc_ic.shape[0]
    HW = Hs * Ws
    x = src_nchw.reshape(B, Cin, HW)               # free reshape, stays NCHW
    ts = _spatial_tile(HW, Cin, Cout, src_nchw.dtype.itemsize)
    out = pl.pallas_call(
        _conv1x1_kernel,
        grid=(B, pl.cdiv(HW, ts)),                 # remainder-tolerant tiling
        in_specs=[
            pl.BlockSpec((1, Cin, ts), lambda bi, j: (bi, 0, j)),
            pl.BlockSpec((Cout, Cin), lambda bi, j: (0, 0)),
            pl.BlockSpec((Cout, 1), lambda bi, j: (0, 0)),
        ],
        out_specs=pl.BlockSpec((1, Cout, ts), lambda bi, j: (bi, 0, j)),
        out_shape=jax.ShapeDtypeStruct((B, Cout, HW), src_nchw.dtype),
        compiler_params=pltpu.CompilerParams(
            dimension_semantics=("parallel", "parallel"),
            vmem_limit_bytes=32 * 1024 * 1024,     # > budget, < v7x 64 MiB
        ),
    )(x, w_oc_ic, b.reshape(Cout, 1))
    return out.reshape(B, Cout, Hs, Ws)


# ----------------------------------------------------------------------------
# Fused class_embed + bbox cMLP head over row-flattened hs (L*B*Q, H).
#   One wide first matmul x @ [class_w_pad | l0_w]; per-row scale applied to
#   the l0 half AFTER the matmul (identical since scale is a per-row scalar);
#   relu/relu/sigmoid fused; both outputs stored as lane-dense 128-wide slabs.
# ----------------------------------------------------------------------------
def _heads_kernel(x_ref, scale_ref, wf_ref, cbp_ref, b0_ref,
                  w1_ref, b1_ref, w2p_ref, b2p_ref,
                  cls_ref, box_ref):
    cpad = cls_ref.shape[-1]                       # 128-aligned split boundary
    x = x_ref[...]                                                   # (tm, H)

    # fused first stage: class logits + bbox layer-0 in one MXU push
    y = jnp.dot(x, wf_ref[...], preferred_element_type=jnp.float32)  # (tm, cpad+H)
    cls_ref[...] = (y[:, :cpad] + cbp_ref[...]).astype(cls_ref.dtype)

    # bbox cMLP: scale applied post-matmul (per-row scalar), then 2 more linears
    h = scale_ref[...] * y[:, cpad:] + b0_ref[...]
    h = jnp.maximum(h, 0.0)
    h = jnp.dot(h, w1_ref[...], preferred_element_type=jnp.float32) + b1_ref[...]
    h = jnp.maximum(h, 0.0)
    h = jnp.dot(h, w2p_ref[...], preferred_element_type=jnp.float32) + b2p_ref[...]
    box_ref[...] = jax.nn.sigmoid(h).astype(box_ref.dtype)


def _row_tile(n):
    for t in (512, 256, 128, 64, 32, 16, 8):
        if t <= n:
            return t
    return n


def class_and_bbox_heads(hs, scale_b, p):
    L, B, Q, H = hs.shape
    NC = p["class_w"].shape[1]
    CPAD = 128 * pl.cdiv(NC, 128)                  # lane-dense class slab width
    BPAD = 128                                     # lane-dense box slab width
    N = L * B * Q

    x = hs.reshape(N, H)                           # free reshape
    # per-row scale: row (l*B + b)*Q + q  ->  scale_b[b]
    scale_rows = jnp.repeat(jnp.tile(scale_b.astype(jnp.float32), L), Q).reshape(N, 1)

    # padded / fused weights (tiny wrapper-side ops)
    class_w_pad = jnp.pad(p["class_w"], ((0, 0), (0, CPAD - NC)))
    wf = jnp.concatenate([class_w_pad, p["l0_w"]], axis=1)           # (H, CPAD+H)
    cbp = jnp.pad(p["class_b"], (0, CPAD - NC)).reshape(1, CPAD)
    w2p = jnp.pad(p["l2_w"], ((0, 0), (0, BPAD - 4)))                # (H, 128)
    b2p = jnp.pad(p["l2_b"], (0, BPAD - 4)).reshape(1, BPAD)

    tm = _row_tile(N)

    def full2(shape):
        return pl.BlockSpec(shape, lambda i: (0, 0))

    cls_slab, box_slab = pl.pallas_call(
        _heads_kernel,
        grid=(pl.cdiv(N, tm),),
        in_specs=[
            pl.BlockSpec((tm, H), lambda i: (i, 0)),
            pl.BlockSpec((tm, 1), lambda i: (i, 0)),
            full2((H, CPAD + H)),
            full2((1, CPAD)),
            full2((1, H)),
            full2((H, H)),
            full2((1, H)),
            full2((H, BPAD)),
            full2((1, BPAD)),
        ],
        out_specs=[
            pl.BlockSpec((tm, CPAD), lambda i: (i, 0)),
            pl.BlockSpec((tm, BPAD), lambda i: (i, 0)),
        ],
        out_shape=(jax.ShapeDtypeStruct((N, CPAD), hs.dtype),
                   jax.ShapeDtypeStruct((N, BPAD), hs.dtype)),
        compiler_params=pltpu.CompilerParams(dimension_semantics=("parallel",)),
    )(x, scale_rows, wf, cbp,
      p["l0_b"].reshape(1, H),
      p["l1_w"], p["l1_b"].reshape(1, H),
      w2p, b2p)

    cls = cls_slab[:, :NC].reshape(L, B, Q, NC)
    box = box_slab[:, :4].reshape(L, B, Q, 4)
    return cls, box


# ----------------------------------------------------------------------------
# clip head: L2-normalize (f32, rsqrt on EUP), logits = exp(logit_scale) *
# img @ patch^T.  Both orientations come from MXU dot_general contractions on
# the H axis -- no XLU transposes, no logits.T.
# ----------------------------------------------------------------------------
def _clip_kernel(ls_ref, img_ref, patch_ref, li_ref, lp_ref):
    img = img_ref[0].astype(jnp.float32)                             # (Q, H)
    pat = patch_ref[0].astype(jnp.float32)                           # (P, H)
    img = img * jax.lax.rsqrt(jnp.sum(img * img, axis=-1, keepdims=True))
    pat = pat * jax.lax.rsqrt(jnp.sum(pat * pat, axis=-1, keepdims=True))
    dn = (((1,), (1,)), ((), ()))                                    # contract H
    ls = ls_ref[0]
    li = ls * jax.lax.dot_general(img, pat, dn, preferred_element_type=jnp.float32)
    lp = ls * jax.lax.dot_general(pat, img, dn, preferred_element_type=jnp.float32)
    li_ref[0] = li.astype(li_ref.dtype)                              # (Q, P)
    lp_ref[0] = lp.astype(lp_ref.dtype)                              # (P, Q)


def clip_heads(img_feat, patch_feat, logit_scale):
    B, Q, H = img_feat.shape
    P = patch_feat.shape[1]
    ls = jnp.exp(logit_scale).reshape(1).astype(jnp.float32)         # exp hoisted out
    grid_spec = pltpu.PrefetchScalarGridSpec(
        num_scalar_prefetch=1,
        grid=(B,),
        in_specs=[
            pl.BlockSpec((1, Q, H), lambda b, s: (b, 0, 0)),
            pl.BlockSpec((1, P, H), lambda b, s: (b, 0, 0)),
        ],
        out_specs=[
            pl.BlockSpec((1, Q, P), lambda b, s: (b, 0, 0)),
            pl.BlockSpec((1, P, Q), lambda b, s: (b, 0, 0)),
        ],
    )
    return pl.pallas_call(
        _clip_kernel,
        grid_spec=grid_spec,
        out_shape=(jax.ShapeDtypeStruct((B, Q, P), img_feat.dtype),
                   jax.ShapeDtypeStruct((B, P, Q), img_feat.dtype)),
        compiler_params=pltpu.CompilerParams(dimension_semantics=("parallel",)),
    )(ls, img_feat, patch_feat)


# ----------------------------------------------------------------------------
# BOOTPLACE forward (heads only; backbone / transformer outputs are inputs)
# ----------------------------------------------------------------------------
def bootplace_forward(params, src, hs, patch_feat, target_boxes, target_mask):
    # TODO(synk): backbone / transformer / NestedTensor handling are external
    # modules; `src` plays the role of features[-1] and (hs, patch_feat) the
    # transformer outputs.  query_embed.weight would be consumed there.
    proj_src = input_proj_conv1x1(src, params["input_proj_w"], params["input_proj_b"])

    # glue: target_mask.unsqueeze(2).expand(-1,-1,4) * target_boxes
    tb = target_boxes * target_mask[:, :, None]

    # cMLP location gating fc1->relu->fc2: tiny (B, 4Q) matmuls, left to XLA.
    B = tb.shape[0]
    loc = tb.reshape(B, -1)
    loc = jnp.maximum(jnp.dot(loc, params["fc1_w"]) + params["fc1_b"], 0.0)
    loc = jnp.dot(loc, params["fc2_w"]) + params["fc2_b"]            # (B, 1)
    scale_b = loc.reshape(B)

    outputs_class, outputs_coord = class_and_bbox_heads(hs, scale_b, params)
    pred_clip, pred_clip2 = clip_heads(hs[-1], patch_feat, params["logit_scale"])

    return {
        "pred_logits": outputs_class[-1],
        "pred_boxes": outputs_coord[-1],
        "pred_clip": pred_clip,
        "pred_clip2": pred_clip2,
        "proj_src": proj_src,   # would feed the transformer in the full model
    }


# ----------------------------------------------------------------------------
# Deterministic parameter init (shapes follow the module __init__)
# ----------------------------------------------------------------------------
def init_params(key, *, num_channels, hidden, num_classes, num_queries):
    def dense(k, fan_in, fan_out, shape=None):
        kw, kb = jax.random.split(k)
        lim = 1.0 / (fan_in ** 0.5)
        wshape = (fan_in, fan_out) if shape is None else shape
        w = jax.random.uniform(kw, wshape, jnp.float32, -lim, lim)
        b = jax.random.uniform(kb, (fan_out,), jnp.float32, -lim, lim)
        return w, b

    keys = jax.random.split(key, 8)
    p = {}
    # 1x1 conv stored PyTorch-style as (Cout, Cin) (kernel dims squeezed)
    p["input_proj_w"], p["input_proj_b"] = dense(
        keys[0], num_channels, hidden, shape=(hidden, num_channels))
    p["class_w"], p["class_b"] = dense(keys[1], hidden, num_classes + 1)
    p["fc1_w"], p["fc1_b"] = dense(keys[2], num_queries * 4, num_queries)
    p["fc2_w"], p["fc2_b"] = dense(keys[3], num_queries, 1)
    p["l0_w"], p["l0_b"] = dense(keys[4], hidden, hidden)
    p["l1_w"], p["l1_b"] = dense(keys[5], hidden, hidden)
    p["l2_w"], p["l2_b"] = dense(keys[6], hidden, 4)
    p["query_embed"] = jax.random.normal(keys[7], (num_queries, hidden), jnp.float32)  # transformer only
    p["logit_scale"] = jnp.array(jnp.log(1.0 / 0.07), jnp.float32)
    return p


if __name__ == "__main__":
    key = jax.random.PRNGKey(0)
    B, L, Q, H, P = 2, 2, 8, 32, 8          # batch, decoder layers, queries, hidden, patches
    C_back, num_classes = 8, 4
    Hs = Ws = 16

    pkey, *dkeys = jax.random.split(key, 6)
    params = init_params(pkey, num_channels=C_back, hidden=H,
                         num_classes=num_classes, num_queries=Q)

    src = jax.random.normal(dkeys[0], (B, C_back, Hs, Ws), jnp.float32)      # backbone feature (NCHW)
    hs = jax.random.normal(dkeys[1], (L, B, Q, H), jnp.float32)              # decoder states
    patch_feat = jax.random.normal(dkeys[2], (B, P, H), jnp.float32)         # patch encodings
    target_boxes = jax.random.uniform(dkeys[3], (B, Q, 4), jnp.float32)
    target_mask = (jax.random.uniform(dkeys[4], (B, Q)) > 0.5).astype(jnp.float32)

    out = jax.jit(bootplace_forward)(params, src, hs, patch_feat, target_boxes, target_mask)
    jax.block_until_ready(out)

    assert out["pred_logits"].shape == (B, Q, num_classes + 1)
    assert out["pred_boxes"].shape == (B, Q, 4)
    assert out["pred_clip"].shape == (B, Q, P)
    assert out["pred_clip2"].shape == (B, P, Q)
    assert out["proj_src"].shape == (B, H, Hs, Ws)
    print("KERNEL_OK")
</pallas_src>

<mosaic_0001>
module attributes {stable_mosaic.version = 11 : i64} {
  func.func @_clip_kernel(%arg0: i32, %arg1: memref<1xf32, #tpu.memory_space<smem>>, %arg2: memref<1x8x32xf32, #tpu.memory_space<vmem>>, %arg3: memref<1x8x32xf32, #tpu.memory_space<vmem>>, %arg4: memref<1x8x8xf32, #tpu.memory_space<vmem>>, %arg5: memref<1x8x8xf32, #tpu.memory_space<vmem>>) attributes {dimension_semantics = [#tpu.dimension_semantics<parallel>], iteration_bounds = array<i64: 2>, scalar_prefetch = 1 : i64, scratch_operands = 0 : i64, tpu.core_type = #tpu.core_type<tc>, window_params = [{transform_indices = @transform_0, window_bounds = array<i64: 1, 8, 32>}, {transform_indices = @transform_1, window_bounds = array<i64: 1, 8, 32>}, {transform_indices = @transform_2, window_bounds = array<i64: 1, 8, 8>}, {transform_indices = @transform_3, window_bounds = array<i64: 1, 8, 8>}]} {
    %c0 = arith.constant 0 : index
    %c0_0 = arith.constant 0 : index
    %c0_1 = arith.constant 0 : index
    %0 = vector.load %arg2[%c0, %c0_0, %c0_1] : memref<1x8x32xf32, #tpu.memory_space<vmem>>, vector<1x8x32xf32>
    %1 = vector.shape_cast %0 : vector<1x8x32xf32> to vector<8x32xf32>
    %c0_2 = arith.constant 0 : index
    %c0_3 = arith.constant 0 : index
    %c0_4 = arith.constant 0 : index
    %2 = vector.load %arg3[%c0_2, %c0_3, %c0_4] : memref<1x8x32xf32, #tpu.memory_space<vmem>>, vector<1x8x32xf32>
    %3 = vector.shape_cast %2 : vector<1x8x32xf32> to vector<8x32xf32>
    %4 = arith.mulf %1, %1 : vector<8x32xf32>
    %cst = arith.constant dense<0.000000e+00> : vector<8xf32>
    %5 = vector.multi_reduction <add>, %4, %cst [1] : vector<8x32xf32> to vector<8xf32>
    %6 = vector.shape_cast %5 : vector<8xf32> to vector<8x1xf32>
    %7 = math.rsqrt %6 : vector<8x1xf32>
    %8 = vector.broadcast %7 : vector<8x1xf32> to vector<8x32xf32>
    %9 = arith.mulf %1, %8 : vector<8x32xf32>
    %10 = arith.mulf %3, %3 : vector<8x32xf32>
    %cst_5 = arith.constant dense<0.000000e+00> : vector<8xf32>
    %11 = vector.multi_reduction <add>, %10, %cst_5 [1] : vector<8x32xf32> to vector<8xf32>
    %12 = vector.shape_cast %11 : vector<8xf32> to vector<8x1xf32>
    %13 = math.rsqrt %12 : vector<8x1xf32>
    %14 = vector.broadcast %13 : vector<8x1xf32> to vector<8x32xf32>
    %15 = arith.mulf %3, %14 : vector<8x32xf32>
    %c0_6 = arith.constant 0 : index
    %16 = memref.load %arg1[%c0_6] : memref<1xf32, #tpu.memory_space<smem>>
    %cst_7 = arith.constant dense<0.000000e+00> : vector<8x8xf32>
    %17 = tpu.matmul %9, %15, %cst_7 {dimension_numbers = #tpu.dot_dimension_numbers<[1], [1], [0], [0], [0, 0, 1, 0], [], []>} : vector<8x32xf32>, vector<8x32xf32>, vector<8x8xf32> -> vector<8x8xf32>
    %18 = vector.broadcast %16 : f32 to vector<8x8xf32>
    %19 = arith.mulf %18, %17 : vector<8x8xf32>
    %cst_8 = arith.constant dense<0.000000e+00> : vector<8x8xf32>
    %20 = tpu.matmul %15, %9, %cst_8 {dimension_numbers = #tpu.dot_dimension_numbers<[1], [1], [0], [0], [0, 0, 1, 0], [], []>} : vector<8x32xf32>, vector<8x32xf32>, vector<8x8xf32> -> vector<8x8xf32>
    %21 = vector.broadcast %16 : f32 to vector<8x8xf32>
    %22 = arith.mulf %21, %20 : vector<8x8xf32>
    %c0_9 = arith.constant 0 : index
    %c0_10 = arith.constant 0 : index
    %c0_11 = arith.constant 0 : index
    %23 = vector.load %arg4[%c0_9, %c0_10, %c0_11] : memref<1x8x8xf32, #tpu.memory_space<vmem>>, vector<1x8x8xf32>
    %24 = vector.shape_cast %23 : vector<1x8x8xf32> to vector<8x8xf32>
    %25 = vector.shape_cast %19 : vector<8x8xf32> to vector<1x8x8xf32>
    tpu.vector_store %arg4[%c0_9, %c0_10, %c0_11], %25 {strides = array<i32>} : memref<1x8x8xf32, #tpu.memory_space<vmem>>, vector<1x8x8xf32>,
    %c0_12 = arith.constant 0 : index
    %c0_13 = arith.constant 0 : index
    %c0_14 = arith.constant 0 : index
    %26 = vector.load %arg5[%c0_12, %c0_13, %c0_14] : memref<1x8x8xf32, #tpu.memory_space<vmem>>, vector<1x8x8xf32>
    %27 = vector.shape_cast %26 : vector<1x8x8xf32> to vector<8x8xf32>
    %28 = vector.shape_cast %22 : vector<8x8xf32> to vector<1x8x8xf32>
    tpu.vector_store %arg5[%c0_12, %c0_13, %c0_14], %28 {strides = array<i32>} : memref<1x8x8xf32, #tpu.memory_space<vmem>>, vector<1x8x8xf32>,
    return
  }
  func.func @transform_0(%arg0: i32, %arg1: memref<1xf32, #tpu.memory_space<smem>>) -> (i32, i32, i32) {
    %c0_i32 = arith.constant 0 : i32
    %c0_i32_0 = arith.constant 0 : i32
    %c0_i32_1 = arith.constant 0 : i32
    return %arg0, %c0_i32, %c0_i32_0 : i32, i32, i32
  }
  func.func @transform_1(%arg0: i32, %arg1: memref<1xf32, #tpu.memory_space<smem>>) -> (i32, i32, i32) {
    %c0_i32 = arith.constant 0 : i32
    %c0_i32_0 = arith.constant 0 : i32
    %c0_i32_1 = arith.constant 0 : i32
    return %arg0, %c0_i32, %c0_i32_0 : i32, i32, i32
  }
  func.func @transform_2(%arg0: i32, %arg1: memref<1xf32, #tpu.memory_space<smem>>) -> (i32, i32, i32) {
    %c0_i32 = arith.constant 0 : i32
    %c0_i32_0 = arith.constant 0 : i32
    %c0_i32_1 = arith.constant 0 : i32
    return %arg0, %c0_i32, %c0_i32_0 : i32, i32, i32
  }
  func.func @transform_3(%arg0: i32, %arg1: memref<1xf32, #tpu.memory_space<smem>>) -> (i32, i32, i32) {
    %c0_i32 = arith.constant 0 : i32
    %c0_i32_0 = arith.constant 0 : i32
    %c0_i32_1 = arith.constant 0 : i32
    return %arg0, %c0_i32, %c0_i32_0 : i32, i32, i32
  }
}

module attributes {stable_mosaic.version = 11 : i64} {
  func.func @_heads_kernel(%arg0: i32, %arg1: memref<32x32xf32, #tpu.memory_space<vmem>>, %arg2: memref<32x1xf32, #tpu.memory_space<vmem>>, %arg3: memref<32x160xf32, #tpu.memory_space<vmem>>, %arg4: memref<1x128xf32, #tpu.memory_space<vmem>>, %arg5: memref<1x32xf32, #tpu.memory_space<vmem>>, %arg6: memref<32x32xf32, #tpu.memory_space<vmem>>, %arg7: memref<1x32xf32, #tpu.memory_space<vmem>>, %arg8: memref<32x128xf32, #tpu.memory_space<vmem>>, %arg9: memref<1x128xf32, #tpu.memory_space<vmem>>, %arg10: memref<32x128xf32, #tpu.memory_space<vmem>>, %arg11: memref<32x128xf32, #tpu.memory_space<vmem>>) attributes {dimension_semantics = [#tpu.dimension_semantics<parallel>], iteration_bounds = array<i64: 1>, scalar_prefetch = 0 : i64, scratch_operands = 0 : i64, tpu.core_type = #tpu.core_type<tc>, window_params = [{transform_indices = @transform_0, window_bounds = array<i64: 32, 32>}, {transform_indices = @transform_1, window_bounds = array<i64: 32, 1>}, {pipeline_mode = #tpu.pipeline_mode<synchronous>, transform_indices = @transform_2, window_bounds = array<i64: 32, 160>}, {pipeline_mode = #tpu.pipeline_mode<synchronous>, transform_indices = @transform_3, window_bounds = array<i64: 1, 128>}, {pipeline_mode = #tpu.pipeline_mode<synchronous>, transform_indices = @transform_4, window_bounds = array<i64: 1, 32>}, {pipeline_mode = #tpu.pipeline_mode<synchronous>, transform_indices = @transform_5, window_bounds = array<i64: 32, 32>}, {pipeline_mode = #tpu.pipeline_mode<synchronous>, transform_indices = @transform_6, window_bounds = array<i64: 1, 32>}, {pipeline_mode = #tpu.pipeline_mode<synchronous>, transform_indices = @transform_7, window_bounds = array<i64: 32, 128>}, {pipeline_mode = #tpu.pipeline_mode<synchronous>, transform_indices = @transform_8, window_bounds = array<i64: 1, 128>}, {transform_indices = @transform_9, window_bounds = array<i64: 32, 128>}, {transform_indices = @transform_10, window_bounds = array<i64: 32, 128>}]} {
    %c0 = arith.constant 0 : index
    %c0_0 = arith.constant 0 : index
    %0 = vector.load %arg1[%c0, %c0_0] : memref<32x32xf32, #tpu.memory_space<vmem>>, vector<32x32xf32>
    %c0_1 = arith.constant 0 : index
    %c0_2 = arith.constant 0 : index
    %1 = vector.load %arg3[%c0_1, %c0_2] : memref<32x160xf32, #tpu.memory_space<vmem>>, vector<32x160xf32>
    %cst = arith.constant dense<0.000000e+00> : vector<32x160xf32>
    %2 = tpu.matmul %0, %1, %cst {dimension_numbers = #tpu.dot_dimension_numbers<[1], [0], [0], [1], [0, 0, 1, 1], [], []>} : vector<32x32xf32>, vector<32x160xf32>, vector<32x160xf32> -> vector<32x160xf32>
    %3 = vector.extract_strided_slice %2 {offsets = [0, 0], sizes = [32, 128], strides = [1, 1]} : vector<32x160xf32> to vector<32x128xf32>
    %c0_3 = arith.constant 0 : index
    %c0_4 = arith.constant 0 : index
    %4 = vector.load %arg4[%c0_3, %c0_4] : memref<1x128xf32, #tpu.memory_space<vmem>>, vector<1x128xf32>
    %5 = vector.broadcast %4 : vector<1x128xf32> to vector<32x128xf32>
    %6 = arith.addf %3, %5 : vector<32x128xf32>
    %c0_5 = arith.constant 0 : index
    %c0_6 = arith.constant 0 : index
    %7 = vector.load %arg10[%c0_5, %c0_6] : memref<32x128xf32, #tpu.memory_space<vmem>>, vector<32x128xf32>
    tpu.vector_store %arg10[%c0_5, %c0_6], %6 {strides = array<i32>} : memref<32x128xf32, #tpu.memory_space<vmem>>, vector<32x128xf32>,
    %c0_7 = arith.constant 0 : index
    %c0_8 = arith.constant 0 : index
    %8 = vector.load %arg2[%c0_7, %c0_8] : memref<32x1xf32, #tpu.memory_space<vmem>>, vector<32x1xf32>
    %9 = vector.extract_strided_slice %2 {offsets = [0, 128], sizes = [32, 32], strides = [1, 1]} : vector<32x160xf32> to vector<32x32xf32>
    %10 = vector.broadcast %8 : vector<32x1xf32> to vector<32x32xf32>
    %11 = arith.mulf %10, %9 : vector<32x32xf32>
    %c0_9 = arith.constant 0 : index
    %c0_10 = arith.constant 0 : index
    %12 = vector.load %arg5[%c0_9, %c0_10] : memref<1x32xf32, #tpu.memory_space<vmem>>, vector<1x32xf32>
    %13 = vector.broadcast %12 : vector<1x32xf32> to vector<32x32xf32>
    %14 = arith.addf %11, %13 : vector<32x32xf32>
    %cst_11 = arith.constant 0.000000e+00 : f32
    %15 = vector.broadcast %cst_11 : f32 to vector<32x32xf32>
    %16 = arith.maximumf %14, %15 : vector<32x32xf32>
    %c0_12 = arith.constant 0 : index
    %c0_13 = arith.constant 0 : index
    %17 = vector.load %arg6[%c0_12, %c0_13] : memref<32x32xf32, #tpu.memory_space<vmem>>, vector<32x32xf32>
    %cst_14 = arith.constant dense<0.000000e+00> : vector<32x32xf32>
    %18 = tpu.matmul %16, %17, %cst_14 {dimension_numbers = #tpu.dot_dimension_numbers<[1], [0], [0], [1], [0, 0, 1, 1], [], []>} : vector<32x32xf32>, vector<32x32xf32>, vector<32x32xf32> -> vector<32x32xf32>
    %c0_15 = arith.constant 0 : index
    %c0_16 = arith.constant 0 : index
    %19 = vector.load %arg7[%c0_15, %c0_16] : memref<1x32xf32, #tpu.memory_space<vmem>>, vector<1x32xf32>
    %20 = vector.broadcast %19 : vector<1x32xf32> to vector<32x32xf32>
    %21 = arith.addf %18, %20 : vector<32x32xf32>
    %cst_17 = arith.constant 0.000000e+00 : f32
    %22 = vector.broadcast %cst_17 : f32 to vector<32x32xf32>
    %23 = arith.maximumf %21, %22 : vector<32x32xf32>
    %c0_18 = arith.constant 0 : index
    %c0_19 = arith.constant 0 : index
    %24 = vector.load %arg8[%c0_18, %c0_19] : memref<32x128xf32, #tpu.memory_space<vmem>>, vector<32x128xf32>
    %cst_20 = arith.constant dense<0.000000e+00> : vector<32x128xf32>
    %25 = tpu.matmul %23, %24, %cst_20 {dimension_numbers = #tpu.dot_dimension_numbers<[1], [0], [0], [1], [0, 0, 1, 1], [], []>} : vector<32x32xf32>, vector<32x128xf32>, vector<32x128xf32> -> vector<32x128xf32>
    %c0_21 = arith.constant 0 : index
    %c0_22 = arith.constant 0 : index
    %26 = vector.load %arg9[%c0_21, %c0_22] : memref<1x128xf32, #tpu.memory_space<vmem>>, vector<1x128xf32>
    %27 = vector.broadcast %26 : vector<1x128xf32> to vector<32x128xf32>
    %28 = arith.addf %25, %27 : vector<32x128xf32>
    %29 = arith.negf %28 : vector<32x128xf32>
    %30 = math.exp %29 : vector<32x128xf32>
    %cst_23 = arith.constant 1.000000e+00 : f32
    %31 = vector.broadcast %cst_23 : f32 to vector<32x128xf32>
    %32 = arith.addf %31, %30 : vector<32x128xf32>
    %33 = arith.divf %31, %32 : vector<32x128xf32>
    %c0_24 = arith.constant 0 : index
    %c0_25 = arith.constant 0 : index
    %34 = vector.load %arg11[%c0_24, %c0_25] : memref<32x128xf32, #tpu.memory_space<vmem>>, vector<32x128xf32>
    tpu.vector_store %arg11[%c0_24, %c0_25], %33 {strides = array<i32>} : memref<32x128xf32, #tpu.memory_space<vmem>>, vector<32x128xf32>,
    return
  }
  func.func @transform_0(%arg0: i32) -> (i32, i32) {
    %c0_i32 = arith.constant 0 : i32
    %c0_i32_0 = arith.constant 0 : i32
    return %arg0, %c0_i32 : i32, i32
  }
  func.func @transform_1(%arg0: i32) -> (i32, i32) {
    %c0_i32 = arith.constant 0 : i32
    %c0_i32_0 = arith.constant 0 : i32
    return %arg0, %c0_i32 : i32, i32
  }
  func.func @transform_2(%arg0: i32) -> (i32, i32) {
    %c0_i32 = arith.constant 0 : i32
    %c0_i32_0 = arith.constant 0 : i32
    %c0_i32_1 = arith.constant 0 : i32
    return %c0_i32, %c0_i32_0 : i32, i32
  }
  func.func @transform_3(%arg0: i32) -> (i32, i32) {
    %c0_i32 = arith.constant 0 : i32
    %c0_i32_0 = arith.constant 0 : i32
    %c0_i32_1 = arith.constant 0 : i32
    return %c0_i32, %c0_i32_0 : i32, i32
  }
  func.func @transform_4(%arg0: i32) -> (i32, i32) {
    %c0_i32 = arith.constant 0 : i32
    %c0_i32_0 = arith.constant 0 : i32
    %c0_i32_1 = arith.constant 0 : i32
    return %c0_i32, %c0_i32_0 : i32, i32
  }
  func.func @transform_5(%arg0: i32) -> (i32, i32) {
    %c0_i32 = arith.constant 0 : i32
    %c0_i32_0 = arith.constant 0 : i32
    %c0_i32_1 = arith.constant 0 : i32
    return %c0_i32, %c0_i32_0 : i32, i32
  }
  func.func @transform_6(%arg0: i32) -> (i32, i32) {
    %c0_i32 = arith.constant 0 : i32
    %c0_i32_0 = arith.constant 0 : i32
    %c0_i32_1 = arith.constant 0 : i32
    return %c0_i32, %c0_i32_0 : i32, i32
  }
  func.func @transform_7(%arg0: i32) -> (i32, i32) {
    %c0_i32 = arith.constant 0 : i32
    %c0_i32_0 = arith.constant 0 : i32
    %c0_i32_1 = arith.constant 0 : i32
    return %c0_i32, %c0_i32_0 : i32, i32
  }
  func.func @transform_8(%arg0: i32) -> (i32, i32) {
    %c0_i32 = arith.constant 0 : i32
    %c0_i32_0 = arith.constant 0 : i32
    %c0_i32_1 = arith.constant 0 : i32
    return %c0_i32, %c0_i32_0 : i32, i32
  }
  func.func @transform_9(%arg0: i32) -> (i32, i32) {
    %c0_i32 = arith.constant 0 : i32
    %c0_i32_0 = arith.constant 0 : i32
    return %arg0, %c0_i32 : i32, i32
  }
  func.func @transform_10(%arg0: i32) -> (i32, i32) {
    %c0_i32 = arith.constant 0 : i32
    %c0_i32_0 = arith.constant 0 : i32
    return %arg0, %c0_i32 : i32, i32
  }
}

module attributes {stable_mosaic.version = 11 : i64} {
  func.func @_conv1x1_kernel(%arg0: i32, %arg1: i32, %arg2: memref<1x8x256xf32, #tpu.memory_space<vmem>>, %arg3: memref<32x8xf32, #tpu.memory_space<vmem>>, %arg4: memref<32x1xf32, #tpu.memory_space<vmem>>, %arg5: memref<1x32x256xf32, #tpu.memory_space<vmem>>) attributes {dimension_semantics = [#tpu.dimension_semantics<parallel>, #tpu.dimension_semantics<parallel>], iteration_bounds = array<i64: 2, 1>, scalar_prefetch = 0 : i64, scratch_operands = 0 : i64, tpu.core_type = #tpu.core_type<tc>, window_params = [{transform_indices = @transform_0, window_bounds = array<i64: 1, 8, 256>}, {pipeline_mode = #tpu.pipeline_mode<synchronous>, transform_indices = @transform_1, window_bounds = array<i64: 32, 8>}, {pipeline_mode = #tpu.pipeline_mode<synchronous>, transform_indices = @transform_2, window_bounds = array<i64: 32, 1>}, {transform_indices = @transform_3, window_bounds = array<i64: 1, 32, 256>}]} {
    %c0 = arith.constant 0 : index
    %c0_0 = arith.constant 0 : index
    %0 = vector.load %arg3[%c0, %c0_0] : memref<32x8xf32, #tpu.memory_space<vmem>>, vector<32x8xf32>
    %c0_1 = arith.constant 0 : index
    %c0_2 = arith.constant 0 : index
    %c0_3 = arith.constant 0 : index
    %1 = vector.load %arg2[%c0_1, %c0_2, %c0_3] : memref<1x8x256xf32, #tpu.memory_space<vmem>>, vector<1x8x256xf32>
    %2 = vector.shape_cast %1 : vector<1x8x256xf32> to vector<8x256xf32>
    %cst = arith.constant dense<0.000000e+00> : vector<32x256xf32>
    %3 = tpu.matmul %0, %2, %cst {dimension_numbers = #tpu.dot_dimension_numbers<[1], [0], [0], [1], [0, 0, 1, 1], [], []>} : vector<32x8xf32>, vector<8x256xf32>, vector<32x256xf32> -> vector<32x256xf32>
    %c0_4 = arith.constant 0 : index
    %c0_5 = arith.constant 0 : index
    %4 = vector.load %arg4[%c0_4, %c0_5] : memref<32x1xf32, #tpu.memory_space<vmem>>, vector<32x1xf32>
    %5 = vector.broadcast %4 : vector<32x1xf32> to vector<32x256xf32>
    %6 = arith.addf %3, %5 : vector<32x256xf32>
    %c0_6 = arith.constant 0 : index
    %c0_7 = arith.constant 0 : index
    %c0_8 = arith.constant 0 : index
    %7 = vector.load %arg5[%c0_6, %c0_7, %c0_8] : memref<1x32x256xf32, #tpu.memory_space<vmem>>, vector<1x32x256xf32>
    %8 = vector.shape_cast %7 : vector<1x32x256xf32> to vector<32x256xf32>
    %9 = vector.shape_cast %6 : vector<32x256xf32> to vector<1x32x256xf32>
    tpu.vector_store %arg5[%c0_6, %c0_7, %c0_8], %9 {strides = array<i32>} : memref<1x32x256xf32, #tpu.memory_space<vmem>>, vector<1x32x256xf32>,
    return
  }
  func.func @transform_0(%arg0: i32, %arg1: i32) -> (i32, i32, i32) {
    %c0_i32 = arith.constant 0 : i32
    %c0_i32_0 = arith.constant 0 : i32
    return %arg0, %c0_i32, %arg1 : i32, i32, i32
  }
  func.func @transform_1(%arg0: i32, %arg1: i32) -> (i32, i32) {
    %c0_i32 = arith.constant 0 : i32
    %c0_i32_0 = arith.constant 0 : i32
    %c0_i32_1 = arith.constant 0 : i32
    return %c0_i32, %c0_i32_0 : i32, i32
  }
  func.func @transform_2(%arg0: i32, %arg1: i32) -> (i32, i32) {
    %c0_i32 = arith.constant 0 : i32
    %c0_i32_0 = arith.constant 0 : i32
    %c0_i32_1 = arith.constant 0 : i32
    return %c0_i32, %c0_i32_0 : i32, i32
  }
  func.func @transform_3(%arg0: i32, %arg1: i32) -> (i32, i32, i32) {
    %c0_i32 = arith.constant 0 : i32
    %c0_i32_0 = arith.constant 0 : i32
    return %arg0, %c0_i32, %arg1 : i32, i32, i32
  }
}

</mosaic_0001>

<llo_original>
// kernel: tile.6
$region0: #{tile.6}
  #allocation0 [shape = 's32[1]{0}', space=sflag, size = 0x4, scoped, tag = 'scoped memory for tile.6']
  %s0 = inlined_call_operand.vmem [shape: f32[2], index: 0, kind: input, shape index: {}]
  %s1 = inlined_call_operand.vmem [shape: f32[2,2], index: 1, kind: output, shape index: {}]
  // Predicated region
  $region2: #{tile.6} parent=0 // pred_check
    _
  $region3: #{tile.6} parent=0 // pred_check_branch
    %3 = sbr.rel (0) target = $region5
  $region4: #{tile.6} parent=0 // pred_region
    _
  $region5: #{tile.6} parent=0 // pred_fallthru
    _
  %v4 = vld [vmem:[%s0] ss:$0 sm:$0xff]
  %5 = vst [vmem:[%s1] sm:$0x3] %v4

// kernel: tile.7
$region0: #{tile.7}
  %s0 = inlined_call_operand.vmem [shape: f32[2,2], index: 0, kind: input, shape index: {}]
  %s1 = inlined_call_operand.vmem [shape: f32[4], index: 1, kind: output, shape index: {}]
  $region1: #{tile.7} parent=0
    #allocation0 [shape = 'u8[4096]{0}', space=vmem, size = 0x1000, scoped, tag = 'scoped mem for output reshape']
    #allocation1 [shape = 'u8[4096]{0}', space=vmem, size = 0x1000, scoped, tag = 'scoped mem for input reshape']
    %s3 = sshll.u32 1, 2
    %s4 = ssub.s32 %s3, 1
    %v5 = vld [vmem:[%s0] sm:%s4]
    %6 = vst [vmem:[#allocation1] sm:%s4] %v5
    %v7 = vld [vmem:[#allocation1] sm:$0x1]
    %vm8 = vcmask 15360
    %9 = vst.msk [vmem:[#allocation0] sm:$0x1] %vm8, %v7
    %s10 = scalar_lea.vmem [#allocation1], 1
    %v11 = vld [vmem:[%s10] sm:$0x1]
    %12 = vrot.lane.b32.xlu0 %v11, 2
    %v13 = vpop.permute.xlu0 %12
    %vm14 = vcmask 31760
    %15 = vst.msk [vmem:[#allocation0] sm:$0x1] %vm14, %v13
    %s17 = sshll.u32 1, 1
    %s18 = ssub.s32 %s17, 1
    %v20 = vld [vmem:[#allocation0] sm:%s18]
    %s21 = sshll.u32 1, 1
    %s22 = ssub.s32 %s21, 1
    %23 = vst [vmem:[%s1] sm:%s22] %v20

// kernel: bootplace_forward.5
$region0: #{bootplace_forward.5}
  #allocation0 [shape = 'u32[]', space=smem, size = 0x4, offset = 0x4, fixed_abs, tag = 'smem constant byte address 0x4 - core index']
  #allocation1 [shape = 'u32[144,128]{1,0:T(1,128)}', space=vmem, size = 0x12000, scoped, tag = 'internal scratch']
  #allocation2 [shape = 's32[1]{0}', space=sflag, size = 0x4, scoped, tag = 'scoped memory for bootplace_forward.5']
  #allocation3 [shape = 'f32[1]{0:T(128)S(6)}', space=smem, size = 0x200, scoped, tag = 'prefetched SMEM operand 0']
  %s0 = inlined_call_operand.<no memory space> [shape: f32[1], index: 0, kind: input, shape index: {}]
  %s1 = inlined_call_operand.vmem [shape: f32[2,8,32], index: 1, kind: input, shape index: {}]
  %s2 = inlined_call_operand.vmem [shape: f32[2,8,32], index: 2, kind: input, shape index: {}]
  %s3 = inlined_call_operand.hbm [shape: f32[2,8,8], index: 3, kind: output, shape index: {0}]
  %s4 = inlined_call_operand.hbm [shape: f32[2,8,8], index: 4, kind: output, shape index: {1}]
  %5 = xla_tuple %s3, %s4
  %s6 = sld [smem:[#allocation0]]
  $region49: #{bootplace_forward.5} parent=0
    _
  %s8 = ssub.s32 1, %s6
  %s9 = scalar_select 0, %s8, %s6
  %10 = sst [smem:[#allocation3]] %s0
  $region1: #{bootplace_forward.5} parent=0
    #allocation4 [shape = 'u8[8192]{0}', space=vmem, size = 0x2000, scoped, tag = 'output window, operand 0']
    #allocation5 [shape = 's32[2]{0}', space=sflag, size = 0x8, scoped, tag = 'scoped memory for bootplace_forward.5']
    #allocation6 [shape = 'u8[8192]{0}', space=vmem, size = 0x2000, scoped, tag = 'output window, operand 1']
    #allocation7 [shape = 's32[2]{0}', space=sflag, size = 0x8, scoped, tag = 'scoped memory for bootplace_forward.5']
    %11 = vsyncpa [#allocation5], 0
    %s12 = scalar_lea.sflag [#allocation5], 1
    %13 = vsyncpa %s12, 0
    %14 = vsyncpa [#allocation7], 0
    %s15 = scalar_lea.sflag [#allocation7], 1
    %16 = vsyncpa %s15, 0
    loop: start=0, step=1, limit=4
    $region2: #{bootplace_forward.5} parent=1 // loop_pre_header
      _
    $region3: #{bootplace_forward.5} parent=1 // loop_header
      %s18 = sphi 0, %s22
      %p19 = scmp.ge.s32.totalorder %s18, 4
      %s28 = sphi 0, %s30
      %s31 = sphi 0, %s28
      %s32 = sphi 0, %s31
      %s48 = sphi 0, %s32
      %s54 = sphi 0, %s56
      %s57 = sphi 0, %s54
      %s58 = sphi 0, %s57
      %s74 = sphi 0, %s58
      %s80 = sphi 0, %s82
      %s83 = sphi 0, %s80
      %s84 = sphi 0, %s83
      %s100 = sphi 0, %s84
      %s106 = sphi 0, %s108
      %s109 = sphi 0, %s106
      %s110 = sphi 0, %s109
      %s126 = sphi 0, %s110
    $region4: #{bootplace_forward.5} parent=1 // loop_header_branch
      %21 = sbr.rel (%p19) target = $region8
    $region5: #{bootplace_forward.5} parent=1 // loop_body
      %s23 = ssub.s32 %s18, 1
      %s24 = ssub.s32 %s18, 2
      %s25 = sadd.s32 %s18, 1
      %s26 = ssub.s32 %s18, %s25
      %p27 = scmp.eq.s32.totalorder %s26, 0
      %s29 = sadd.s32 %s28, 1
      %s30 = scalar_select %p27, %s28, %s29
      %p33 = pneg %p27
      %p34 = scmp.eq.s32.totalorder %s18, 1
      %p35 = por %p33, %p34
      %p36 = scmp.ne.s32.totalorder %s28, %s31
      %p37 = scmp.eq.s32.totalorder %s18, 0
      %p38 = por %p36, %p37
      %p39 = scmp.ne.s32.totalorder %s28, %s31
      %p40 = scmp.eq.s32.totalorder %s23, 1
      %p41 = por %p39, %p40
      %p42 = scmp.ne.s32.totalorder %s31, %s32
      %p43 = scmp.eq.s32.totalorder %s23, 0
      %p44 = por %p42, %p43
      %p45 = scmp.ne.s32.totalorder %s31, %s32
      %p46 = scmp.eq.s32.totalorder %s24, 1
      %p47 = por %p45, %p46
      %p49 = scmp.ne.s32.totalorder %s32, %s48
      %p50 = scmp.eq.s32.totalorder %s24, 0
      %p51 = por %p49, %p50
      %s52 = ssub.s32 %s18, %s25
      %p53 = scmp.eq.s32.totalorder %s52, 0
      %s55 = sadd.s32 %s54, 1
      %s56 = scalar_select %p53, %s54, %s55
      %p59 = pneg %p53
      %p60 = scmp.eq.s32.totalorder %s18, 1
      %p61 = por %p59, %p60
      %p62 = scmp.ne.s32.totalorder %s54, %s57
      %p63 = scmp.eq.s32.totalorder %s18, 0
      %p64 = por %p62, %p63
      %p65 = scmp.ne.s32.totalorder %s54, %s57
      %p66 = scmp.eq.s32.totalorder %s23, 1
      %p67 = por %p65, %p66
      %p68 = scmp.ne.s32.totalorder %s57, %s58
      %p69 = scmp.eq.s32.totalorder %s23, 0
      %p70 = por %p68, %p69
      %p71 = scmp.ne.s32.totalorder %s57, %s58
      %p72 = scmp.eq.s32.totalorder %s24, 1
      %p73 = por %p71, %p72
      %p75 = scmp.ne.s32.totalorder %s58, %s74
      %p76 = scmp.eq.s32.totalorder %s24, 0
      %p77 = por %p75, %p76
      %s78 = ssub.s32 %s18, %s25
      %p79 = scmp.eq.s32.totalorder %s78, 0
      %s81 = sadd.s32 %s80, 1
      %s82 = scalar_select %p79, %s80, %s81
      %p85 = pneg %p79
      %p86 = scmp.eq.s32.totalorder %s18, 1
      %p87 = por %p85, %p86
      %p88 = scmp.ne.s32.totalorder %s80, %s83
      %p89 = scmp.eq.s32.totalorder %s18, 0
      %p90 = por %p88, %p89
      %p91 = scmp.ne.s32.totalorder %s80, %s83
      %p92 = scmp.eq.s32.totalorder %s23, 1
      %p93 = por %p91, %p92
      %p94 = scmp.ne.s32.totalorder %s83, %s84
      %p95 = scmp.eq.s32.totalorder %s23, 0
      %p96 = por %p94, %p95
      %p97 = scmp.ne.s32.totalorder %s83, %s84
      %p98 = scmp.eq.s32.totalorder %s24, 1
      %p99 = por %p97, %p98
      %p101 = scmp.ne.s32.totalorder %s84, %s100
      %p102 = scmp.eq.s32.totalorder %s24, 0
      %p103 = por %p101, %p102
      %s104 = ssub.s32 %s18, %s25
      %p105 = scmp.eq.s32.totalorder %s104, 0
      %s107 = sadd.s32 %s106, 1
      %s108 = scalar_select %p105, %s106, %s107
      %p111 = pneg %p105
      %p112 = scmp.eq.s32.totalorder %s18, 1
      %p113 = por %p111, %p112
      %p114 = scmp.ne.s32.totalorder %s106, %s109
      %p115 = scmp.eq.s32.totalorder %s18, 0
      %p116 = por %p114, %p115
      %p117 = scmp.ne.s32.totalorder %s106, %s109
      %p118 = scmp.eq.s32.totalorder %s23, 1
      %p119 = por %p117, %p118
      %p120 = scmp.ne.s32.totalorder %s109, %s110
      %p121 = scmp.eq.s32.totalorder %s23, 0
      %p122 = por %p120, %p121
      %p123 = scmp.ne.s32.totalorder %s109, %s110
      %p124 = scmp.eq.s32.totalorder %s24, 1
      %p125 = por %p123, %p124
      %p127 = scmp.ne.s32.totalorder %s110, %s126
      %p128 = scmp.eq.s32.totalorder %s24, 0
      %p129 = por %p127, %p128
      %p130 = scmp.le.s32.totalorder 1, %s18
      %p131 = scmp.lt.s32.totalorder %s18, 3
      %p132 = pnand %p130, %p131
      %p133 = pneg %p132
      // Predicated region
      $region9: #{bootplace_forward.5} parent=5 // pred_check
        _
      $region10: #{bootplace_forward.5} parent=5 // pred_check_branch
        %135 = sbr.rel (%p132) target = $region12
      $region11: #{bootplace_forward.5} parent=5 // pred_region
        %s136 = ssub.s32 %s18, 1
      $region12: #{bootplace_forward.5} parent=5 // pred_fallthru
        _
      %p137 = scmp.lt.s32.totalorder %s18, 2
      // Predicated region
      $region13: #{bootplace_forward.5} parent=5 // pred_check
        %p138 = pneg %p137
      $region14: #{bootplace_forward.5} parent=5 // pred_check_branch
        %140 = sbr.rel (%p138) target = $region16
      $region15: #{bootplace_forward.5} parent=5 // pred_region
        // Predicated region
        $region17: #{bootplace_forward.5} parent=15 // pred_check
          %p141 = pneg %p38
        $region18: #{bootplace_forward.5} parent=15 // pred_check_branch
          %143 = sbr.rel (%p141) target = $region20
        $region19: #{bootplace_forward.5} parent=15 // pred_region
          %p144 = scmp.lt.s32.totalorder %s18, 1
          %s145 = scalar_select %p144, %s18, 1
          %s146 = smul.addr %s145, 8
          %s147 = scalar_lea.vmem %s1, %s146
        $region20: #{bootplace_forward.5} parent=15 // pred_fallthru
          _
        // Predicated region
        $region21: #{bootplace_forward.5} parent=15 // pred_check
          %p148 = pneg %p64
        $region22: #{bootplace_forward.5} parent=15 // pred_check_branch
          %150 = sbr.rel (%p148) target = $region24
        $region23: #{bootplace_forward.5} parent=15 // pred_region
          %p151 = scmp.lt.s32.totalorder %s18, 1
          %s152 = scalar_select %p151, %s18, 1
          %s153 = smul.addr %s152, 8
          %s154 = scalar_lea.vmem %s2, %s153
        $region24: #{bootplace_forward.5} parent=15 // pred_fallthru
          _
      $region16: #{bootplace_forward.5} parent=5 // pred_fallthru
        _
      %p155 = scmp.le.s32.totalorder 1, %s18
      %p156 = scmp.lt.s32.totalorder %s18, 3
      %p157 = pnand %p155, %p156
      %p158 = pneg %p157
      // Predicated region
      $region25: #{bootplace_forward.5} parent=5 // pred_check
        _
      $region26: #{bootplace_forward.5} parent=5 // pred_check_branch
        %160 = sbr.rel (%p157) target = $region28
      $region27: #{bootplace_forward.5} parent=5 // pred_region
        %s161 = ssub.s32 %s18, 1
        %p162 = scmp.lt.s32.totalorder %s23, 1
        %s163 = scalar_select %p162, %s23, 1
        %s164 = smul.addr %s163, 8
        %s165 = scalar_lea.vmem %s1, %s164
        %p166 = pneg %p44
        %p167 = pneg %p41
        %p168 = scmp.lt.s32.totalorder %s23, 1
        %s169 = scalar_select %p168, %s23, 1
        %s170 = smul.addr %s169, 8
        %s171 = scalar_lea.vmem %s2, %s170
        %p172 = pneg %p70
        %p173 = pneg %p67
        %p174 = pneg %p96
        %p175 = pneg %p93
        %s176 = sand.u32 %s83, 1
        %s177 = scalar_lea.sflag [#allocation5], %s176
        %s178 = sand.u32 %s83, 1
        %s179 = smul.addr %s178, 8
        %s180 = scalar_lea.vmem [#allocation4], %s179
        %p181 = pneg %p122
        %p182 = pneg %p119
        %s183 = sand.u32 %s109, 1
        %s184 = scalar_lea.sflag [#allocation7], %s183
        %s185 = sand.u32 %s109, 1
        %s186 = smul.addr %s185, 8
        %s187 = scalar_lea.vmem [#allocation6], %s186
        %p188 = scmp.lt.s32.totalorder %s23, 1
        %s189 = scalar_select %p188, %s23, 1
        %s190 = smul.addr %s189, 8
        %s191 = scalar_lea.vmem %s1, %s190
        %p192 = scmp.lt.s32.totalorder %s23, 1
        %s193 = scalar_select %p192, %s23, 1
        %s194 = smul.addr %s193, 8
        %s195 = scalar_lea.vmem %s2, %s194
        %v196 = vld [vmem:[%s191] sm:$0xff]
        %v197 = vld [vmem:[%s195] sm:$0xff]
        %v198 = vmul.f32 %v196, %v196
        %vm199 = vcmask 261120
        %v200 = vsel %vm199, %v198, 0.0
        %201 = vadd.xlane.f32.xlu0 %v200
        %v202 = vpop.xlane.xlu0 %201
        %v203 = vrsqrt.pop %v202
        %v204 = vmul.f32 %v196, %v203
        %v205 = vmul.f32 %v197, %v197
        %v206 = vsel %vm199, %v205, 0.0
        %207 = vadd.xlane.f32.xlu0 %v206
        %v208 = vpop.xlane.xlu0 %207
        %v209 = vrsqrt.pop %v208
        %v210 = vmul.f32 %v197, %v209
        %s211 = sld [smem:[#allocation3]]
        %v213 = vsel %vm199, %v204, 0
        %v216 = vsel %vm199, %v210, 0
        %218 = vmatprep.subr.mxu0 0.0
        %219 = vmatpush1.xpose.msra.mxu0 0.0
        %220 = vmatprep.subr.mxu0 0.0
        %221 = vmatpush1.xpose.msra.mxu0 0.0
        %222 = vmatprep.subr.mxu0 0.0
        %223 = vmatpush1.xpose.msra.mxu0 0.0
        %224 = vmatprep.subr.mxu0 0.0
        %225 = vmatpush1.xpose.msra.mxu0 0.0
        %226 = vmatprep.subr.mxu0 0.0
        %227 = vmatpush1.xpose.msra.mxu0 0.0
        %228 = vmatprep.subr.mxu0 0.0
        %229 = vmatpush1.xpose.msra.mxu0 0.0
        %230 = vmatprep.subr.mxu0 0.0
        %231 = vmatpush1.xpose.msra.mxu0 0.0
        %232 = vmatprep.subr.mxu0 0.0
        %233 = vmatpush1.xpose.msra.mxu0 0.0
        %234 = vmatprep.subr.mxu0 0.0
        %235 = vmatpush1.xpose.msra.mxu0 0.0
        %236 = vmatprep.subr.mxu0 0.0
        %237 = vmatpush1.xpose.msra.mxu0 0.0
        %238 = vmatprep.subr.mxu0 0.0
        %239 = vmatpush1.xpose.msra.mxu0 0.0
        %240 = vmatprep.subr.mxu0 0.0
        %241 = vmatpush1.xpose.msra.mxu0 0.0
        %242 = vmatprep.subr.mxu0 0.0
        %243 = vmatpush1.xpose.msra.mxu0 0.0
        %244 = vmatprep.subr.mxu0 0.0
        %245 = vmatpush1.xpose.msra.mxu0 0.0
        %246 = vmatprep.subr.mxu0 0.0
        %247 = vmatpush1.xpose.msra.mxu0 0.0
        %248 = vmatprep.subr.mxu0 0.0
        %249 = vmatpush1.xpose.msra.mxu0 %v216
        %250 = vmatprep.subr.mxu0 0.0
        %251 = vmatpush2.xpose.msra.mxu0 0.0
        %252 = vmatprep.subr.mxu0 0.0
        %253 = vmatpush2.xpose.msra.mxu0 0.0
        %254 = vmatprep.subr.mxu0 0.0
        %255 = vmatpush2.xpose.msra.mxu0 0.0
        %256 = vmatprep.subr.mxu0 0.0
        %257 = vmatpush2.xpose.msra.mxu0 0.0
        %258 = vmatprep.subr.mxu0 0.0
        %259 = vmatpush2.xpose.msra.mxu0 0.0
        %260 = vmatprep.subr.mxu0 0.0
        %261 = vmatpush2.xpose.msra.mxu0 0.0
        %262 = vmatprep.subr.mxu0 0.0
        %263 = vmatpush2.xpose.msra.mxu0 0.0
        %264 = vmatprep.subr.mxu0 0.0
        %265 = vmatpush2.xpose.msra.mxu0 0.0
        %266 = vmatprep.subr.mxu0 0.0
        %267 = vmatpush2.xpose.msra.mxu0 0.0
        %268 = vmatprep.subr.mxu0 0.0
        %269 = vmatpush2.xpose.msra.mxu0 0.0
        %270 = vmatprep.subr.mxu0 0.0
        %271 = vmatpush2.xpose.msra.mxu0 0.0
        %272 = vmatprep.subr.mxu0 0.0
        %273 = vmatpush2.xpose.msra.mxu0 0.0
        %274 = vmatprep.subr.mxu0 0.0
        %275 = vmatpush2.xpose.msra.mxu0 0.0
        %276 = vmatprep.subr.mxu0 0.0
        %277 = vmatpush2.xpose.msra.mxu0 0.0
        %278 = vmatprep.subr.mxu0 0.0
        %279 = vmatpush2.xpose.msra.mxu0 0.0
        %280 = vmatprep.subr.mxu0 0.0
        %281 = vmatpush2.xpose.msra.mxu0 0.0
        %282 = vmatprep.mubr.f32.mxu0 0.0
        %283 = vmatmul.mubr.f32.gmra.mxu0 %v213
        %v284 = vpop.f32.mrf.mxu0
        %v285 = vadd.f32 0.0, %v284
        %v286 = vpop.f32.mrf.mxu0
        %287 = vdwg.mxu0
        %v288 = vstv %s211
        %v289 = vmul.f32 %v288, %v285
        %290 = vmatprep.subr.mxu0 0.0
        %291 = vmatpush1.xpose.msra.mxu0 0.0
        %292 = vmatprep.subr.mxu0 0.0
        %293 = vmatpush1.xpose.msra.mxu0 0.0
        %294 = vmatprep.subr.mxu0 0.0
        %295 = vmatpush1.xpose.msra.mxu0 0.0
        %296 = vmatprep.subr.mxu0 0.0
        %297 = vmatpush1.xpose.msra.mxu0 0.0
        %298 = vmatprep.subr.mxu0 0.0
        %299 = vmatpush1.xpose.msra.mxu0 0.0
        %300 = vmatprep.subr.mxu0 0.0
        %301 = vmatpush1.xpose.msra.mxu0 0.0
        %302 = vmatprep.subr.mxu0 0.0
        %303 = vmatpush1.xpose.msra.mxu0 0.0
        %304 = vmatprep.subr.mxu0 0.0
        %305 = vmatpush1.xpose.msra.mxu0 0.0
        %306 = vmatprep.subr.mxu0 0.0
        %307 = vmatpush1.xpose.msra.mxu0 0.0
        %308 = vmatprep.subr.mxu0 0.0
        %309 = vmatpush1.xpose.msra.mxu0 0.0
        %310 = vmatprep.subr.mxu0 0.0
        %311 = vmatpush1.xpose.msra.mxu0 0.0
        %312 = vmatprep.subr.mxu0 0.0
        %313 = vmatpush1.xpose.msra.mxu0 0.0
        %314 = vmatprep.subr.mxu0 0.0
        %315 = vmatpush1.xpose.msra.mxu0 0.0
        %316 = vmatprep.subr.mxu0 0.0
        %317 = vmatpush1.xpose.msra.mxu0 0.0
        %318 = vmatprep.subr.mxu0 0.0
        %319 = vmatpush1.xpose.msra.mxu0 0.0
        %320 = vmatprep.subr.mxu0 0.0
        %321 = vmatpush1.xpose.msra.mxu0 %v213
        %322 = vmatprep.subr.mxu0 0.0
        %323 = vmatpush2.xpose.msra.mxu0 0.0
        %324 = vmatprep.subr.mxu0 0.0
        %325 = vmatpush2.xpose.msra.mxu0 0.0
        %326 = vmatprep.subr.mxu0 0.0
        %327 = vmatpush2.xpose.msra.mxu0 0.0
        %328 = vmatprep.subr.mxu0 0.0
        %329 = vmatpush2.xpose.msra.mxu0 0.0
        %330 = vmatprep.subr.mxu0 0.0
        %331 = vmatpush2.xpose.msra.mxu0 0.0
        %332 = vmatprep.subr.mxu0 0.0
        %333 = vmatpush2.xpose.msra.mxu0 0.0
        %334 = vmatprep.subr.mxu0 0.0
        %335 = vmatpush2.xpose.msra.mxu0 0.0
        %336 = vmatprep.subr.mxu0 0.0
        %337 = vmatpush2.xpose.msra.mxu0 0.0
        %338 = vmatprep.subr.mxu0 0.0
        %339 = vmatpush2.xpose.msra.mxu0 0.0
        %340 = vmatprep.subr.mxu0 0.0
        %341 = vmatpush2.xpose.msra.mxu0 0.0
        %342 = vmatprep.subr.mxu0 0.0
        %343 = vmatpush2.xpose.msra.mxu0 0.0
        %344 = vmatprep.subr.mxu0 0.0
        %345 = vmatpush2.xpose.msra.mxu0 0.0
        %346 = vmatprep.subr.mxu0 0.0
        %347 = vmatpush2.xpose.msra.mxu0 0.0
        %348 = vmatprep.subr.mxu0 0.0
        %349 = vmatpush2.xpose.msra.mxu0 0.0
        %350 = vmatprep.subr.mxu0 0.0
        %351 = vmatpush2.xpose.msra.mxu0 0.0
        %352 = vmatprep.subr.mxu0 0.0
        %353 = vmatpush2.xpose.msra.mxu0 0.0
        %354 = vmatprep.mubr.f32.mxu0 0.0
        %355 = vmatmul.mubr.f32.gmra.mxu0 %v216
        %v356 = vpop.f32.mrf.mxu0
        %v357 = vadd.f32 0.0, %v356
        %v358 = vpop.f32.mrf.mxu0
        %359 = vdwg.mxu0
        %v360 = vmul.f32 %v288, %v357
        %vm361 = vcmask 64512
        %362 = vst.msk [vmem:[%s180] sm:$0xff] %vm361, %v289
        %363 = vst.msk [vmem:[%s187] sm:$0xff] %vm361, %v360
        %s364 = sand.u32 %s83, 1
        %s365 = scalar_lea.sflag [#allocation5], %s364
        %s366 = sand.u32 %s83, 1
        %s367 = smul.addr %s366, 8
        %s368 = scalar_lea.vmem [#allocation4], %s367
        %s369 = sand.u32 %s109, 1
        %s370 = scalar_lea.sflag [#allocation7], %s369
        %s371 = sand.u32 %s109, 1
        %s372 = smul.addr %s371, 8
        %s373 = scalar_lea.vmem [#allocation6], %s372
        // Predicated region
        $region29: #{bootplace_forward.5} parent=27 // pred_check
          %p374 = pneg %p93
        $region30: #{bootplace_forward.5} parent=27 // pred_check_branch
          %376 = sbr.rel (%p374) target = $region32
        $region31: #{bootplace_forward.5} parent=27 // pred_region
          %s378 = ssub.s32 128, 128
          %379 = vsyncadd %s365, %s378
          %s380 = smul.addr %s23, 128
          %s381 = scalar_lea.hbm %s3, %s380
          %s383 = sshll.u32 %s368, 4
          %s384 = int_to_ptr.vmem [resolvable:$true] %s383
          %386 = dma.vmem_to_hbm [thread:$0]  %s384, 128, %s381, %s365
        $region32: #{bootplace_forward.5} parent=27 // pred_fallthru
          _
        // Predicated region
        $region33: #{bootplace_forward.5} parent=27 // pred_check
          %p387 = pneg %p119
        $region34: #{bootplace_forward.5} parent=27 // pred_check_branch
          %389 = sbr.rel (%p387) target = $region36
        $region35: #{bootplace_forward.5} parent=27 // pred_region
          %s391 = ssub.s32 128, 128
          %392 = vsyncadd %s370, %s391
          %s393 = smul.addr %s23, 128
          %s394 = scalar_lea.hbm %s4, %s393
          %s396 = sshll.u32 %s373, 4
          %s397 = int_to_ptr.vmem [resolvable:$true] %s396
          %399 = dma.vmem_to_hbm [thread:$0]  %s397, 128, %s394, %s370
        $region36: #{bootplace_forward.5} parent=27 // pred_fallthru
          _
      $region28: #{bootplace_forward.5} parent=5 // pred_fallthru
        _
      %p400 = scmp.le.s32.totalorder 2, %s18
      // Predicated region
      $region37: #{bootplace_forward.5} parent=5 // pred_check
        %p401 = pneg %p400
      $region38: #{bootplace_forward.5} parent=5 // pred_check_branch
        %403 = sbr.rel (%p401) target = $region40
      $region39: #{bootplace_forward.5} parent=5 // pred_region
        %s404 = ssub.s32 %s18, 2
        // Predicated region
        $region41: #{bootplace_forward.5} parent=39 // pred_check
          %p405 = pneg %p99
        $region42: #{bootplace_forward.5} parent=39 // pred_check_branch
          %407 = sbr.rel (%p405) target = $region44
        $region43: #{bootplace_forward.5} parent=39 // pred_region
          %s408 = sand.u32 %s84, 1
          %s409 = scalar_lea.sflag [#allocation5], %s408
          %s410 = sand.u32 %s84, 1
          %s411 = smul.addr %s410, 8
          %s412 = scalar_lea.vmem [#allocation4], %s411
          %413 = dma.done %s409, 128
        $region44: #{bootplace_forward.5} parent=39 // pred_fallthru
          _
        // Predicated region
        $region45: #{bootplace_forward.5} parent=39 // pred_check
          %p414 = pneg %p125
        $region46: #{bootplace_forward.5} parent=39 // pred_check_branch
          %416 = sbr.rel (%p414) target = $region48
        $region47: #{bootplace_forward.5} parent=39 // pred_region
          %s417 = sand.u32 %s110, 1
          %s418 = scalar_lea.sflag [#allocation7], %s417
          %s419 = sand.u32 %s110, 1
          %s420 = smul.addr %s419, 8
          %s421 = scalar_lea.vmem [#allocation6], %s420
          %422 = dma.done %s418, 128
        $region48: #{bootplace_forward.5} parent=39 // pred_fallthru
          _
      $region40: #{bootplace_forward.5} parent=5 // pred_fallthru
        _
    $region6: #{bootplace_forward.5} parent=1 // loop_footer
      %s22 = sadd.s32 1, %s18
    $region7: #{bootplace_forward.5} parent=1 // loop_footer_branch
      %17 = sbr.rel target = $region3
    $region8: #{bootplace_forward.5} parent=1 // loop_exit
      _
    %423 = vsyncpa [#allocation5], 1
    %s424 = scalar_lea.sflag [#allocation5], 1
    %425 = vsyncpa %s424, 1
    %426 = vsyncpa [#allocation7], 1
    %s427 = scalar_lea.sflag [#allocation7], 1
    %428 = vsyncpa %s427, 1

// kernel: bootplace_forward.3
$region0: #{bootplace_forward.3}
  #allocation0 [shape = 'u32[]', space=smem, size = 0x4, offset = 0x4, fixed_abs, tag = 'smem constant byte address 0x4 - core index']
  #allocation1 [shape = 'u32[144,128]{1,0:T(1,128)}', space=vmem, size = 0x12000, scoped, tag = 'internal scratch']
  %s0 = inlined_call_operand.vmem [shape: f32[2,8,256], index: 0, kind: input, shape index: {}]
  %s1 = inlined_call_operand.vmem [shape: f32[32,8], index: 1, kind: input, shape index: {}]
  %s2 = inlined_call_operand.vmem [shape: f32[32,1], index: 2, kind: input, shape index: {}]
  %s3 = inlined_call_operand.vmem [shape: f32[2,32,256], index: 3, kind: output, shape index: {}]
  %s4 = sld [smem:[#allocation0]]
  $region45: #{bootplace_forward.3} parent=0
    _
  %s6 = ssub.s32 1, %s4
  %s7 = scalar_select 0, %s6, %s4
  loop: start=0, step=1, limit=4
  $region2: #{bootplace_forward.3} parent=0 // loop_pre_header
    _
  $region3: #{bootplace_forward.3} parent=0 // loop_header
    %s9 = sphi 0, %s13
    %p10 = scmp.ge.s32.totalorder %s9, 4
    %s16 = sphi 0, %s28
    %s17 = sphi 0, %s24
    %s18 = sphi 0, %s16
    %s19 = sphi 0, %s17
    %s20 = sphi 0, %s18
    %s21 = sphi 0, %s19
    %s33 = sphi 0, %s35
    %s36 = sphi 0, %s33
    %s37 = sphi 0, %s36
    %s53 = sphi 0, %s37
    %s57 = sphi 0, %s57
    %s59 = sphi 0, %s57
    %s60 = sphi 0, %s59
    %s74 = sphi 0, %s60
    %s78 = sphi 0, %s78
    %s80 = sphi 0, %s78
    %s81 = sphi 0, %s80
    %s95 = sphi 0, %s81
    %s103 = sphi 0, %s105
    %s106 = sphi 0, %s103
    %s107 = sphi 0, %s106
    %s123 = sphi 0, %s107
  $region4: #{bootplace_forward.3} parent=0 // loop_header_branch
    %12 = sbr.rel (%p10) target = $region8
  $region5: #{bootplace_forward.3} parent=0 // loop_body
    %s14 = ssub.s32 %s9, 1
    %s15 = ssub.s32 %s9, 2
    %s22 = sadd.s32 1, %s17
    %p23 = scmp.ge.s32.totalorder %s22, 1
    %s24 = scalar_select %p23, 0, %s22
    %s25 = sadd.s32 1, %s16
    %s26 = scalar_select %p23, %s25, %s16
    %p27 = scmp.ge.s32.totalorder %s26, 2
    %s28 = scalar_select %p27, 0, %s26
    %s29 = ssub.s32 %s16, %s28
    %s30 = ssub.s32 %s17, %s24
    %s31 = sor.u32 %s29, %s30
    %p32 = scmp.eq.s32.totalorder %s31, 0
    %s34 = sadd.s32 %s33, 1
    %s35 = scalar_select %p32, %s33, %s34
    %p38 = pneg %p32
    %p39 = scmp.eq.s32.totalorder %s9, 1
    %p40 = por %p38, %p39
    %p41 = scmp.ne.s32.totalorder %s33, %s36
    %p42 = scmp.eq.s32.totalorder %s9, 0
    %p43 = por %p41, %p42
    %p44 = scmp.ne.s32.totalorder %s33, %s36
    %p45 = scmp.eq.s32.totalorder %s14, 1
    %p46 = por %p44, %p45
    %p47 = scmp.ne.s32.totalorder %s36, %s37
    %p48 = scmp.eq.s32.totalorder %s14, 0
    %p49 = por %p47, %p48
    %p50 = scmp.ne.s32.totalorder %s36, %s37
    %p51 = scmp.eq.s32.totalorder %s15, 1
    %p52 = por %p50, %p51
    %p54 = scmp.ne.s32.totalorder %s37, %s53
    %p55 = scmp.eq.s32.totalorder %s15, 0
    %p56 = por %p54, %p55
    %s58 = sadd.s32 %s57, 1
    %p61 = scmp.eq.s32.totalorder %s9, 1
    %p62 = scmp.ne.s32.totalorder %s57, %s59
    %p63 = scmp.eq.s32.totalorder %s9, 0
    %p64 = por %p62, %p63
    %p65 = scmp.ne.s32.totalorder %s57, %s59
    %p66 = scmp.eq.s32.totalorder %s14, 1
    %p67 = por %p65, %p66
    %p68 = scmp.ne.s32.totalorder %s59, %s60
    %p69 = scmp.eq.s32.totalorder %s14, 0
    %p70 = por %p68, %p69
    %p71 = scmp.ne.s32.totalorder %s59, %s60
    %p72 = scmp.eq.s32.totalorder %s15, 1
    %p73 = por %p71, %p72
    %p75 = scmp.ne.s32.totalorder %s60, %s74
    %p76 = scmp.eq.s32.totalorder %s15, 0
    %p77 = por %p75, %p76
    %s79 = sadd.s32 %s78, 1
    %p82 = scmp.eq.s32.totalorder %s9, 1
    %p83 = scmp.ne.s32.totalorder %s78, %s80
    %p84 = scmp.eq.s32.totalorder %s9, 0
    %p85 = por %p83, %p84
    %p86 = scmp.ne.s32.totalorder %s78, %s80
    %p87 = scmp.eq.s32.totalorder %s14, 1
    %p88 = por %p86, %p87
    %p89 = scmp.ne.s32.totalorder %s80, %s81
    %p90 = scmp.eq.s32.totalorder %s14, 0
    %p91 = por %p89, %p90
    %p92 = scmp.ne.s32.totalorder %s80, %s81
    %p93 = scmp.eq.s32.totalorder %s15, 1
    %p94 = por %p92, %p93
    %p96 = scmp.ne.s32.totalorder %s81, %s95
    %p97 = scmp.eq.s32.totalorder %s15, 0
    %p98 = por %p96, %p97
    %s99 = ssub.s32 %s16, %s28
    %s100 = ssub.s32 %s17, %s24
    %s101 = sor.u32 %s99, %s100
    %p102 = scmp.eq.s32.totalorder %s101, 0
    %s104 = sadd.s32 %s103, 1
    %s105 = scalar_select %p102, %s103, %s104
    %p108 = pneg %p102
    %p109 = scmp.eq.s32.totalorder %s9, 1
    %p110 = por %p108, %p109
    %p111 = scmp.ne.s32.totalorder %s103, %s106
    %p112 = scmp.eq.s32.totalorder %s9, 0
    %p113 = por %p111, %p112
    %p114 = scmp.ne.s32.totalorder %s103, %s106
    %p115 = scmp.eq.s32.totalorder %s14, 1
    %p116 = por %p114, %p115
    %p117 = scmp.ne.s32.totalorder %s106, %s107
    %p118 = scmp.eq.s32.totalorder %s14, 0
    %p119 = por %p117, %p118
    %p120 = scmp.ne.s32.totalorder %s106, %s107
    %p121 = scmp.eq.s32.totalorder %s15, 1
    %p122 = por %p120, %p121
    %p124 = scmp.ne.s32.totalorder %s107, %s123
    %p125 = scmp.eq.s32.totalorder %s15, 0
    %p126 = por %p124, %p125
    %p127 = scmp.le.s32.totalorder 1, %s9
    %p128 = scmp.lt.s32.totalorder %s9, 3
    %p129 = pnand %p127, %p128
    %p130 = pneg %p129
    // Predicated region
    $region9: #{bootplace_forward.3} parent=5 // pred_check
      _
    $region10: #{bootplace_forward.3} parent=5 // pred_check_branch
      %132 = sbr.rel (%p129) target = $region12
    $region11: #{bootplace_forward.3} parent=5 // pred_region
      %s133 = ssub.s32 %s9, 1
      // Predicated region
      $region13: #{bootplace_forward.3} parent=11 // pred_check
        %p134 = pneg %p70
      $region14: #{bootplace_forward.3} parent=11 // pred_check_branch
        %136 = sbr.rel (%p134) target = $region16
      $region15: #{bootplace_forward.3} parent=11 // pred_region
        _
      $region16: #{bootplace_forward.3} parent=11 // pred_fallthru
        _
      // Predicated region
      $region17: #{bootplace_forward.3} parent=11 // pred_check
        %p137 = pneg %p91
      $region18: #{bootplace_forward.3} parent=11 // pred_check_branch
        %139 = sbr.rel (%p137) target = $region20
      $region19: #{bootplace_forward.3} parent=11 // pred_region
        _
      $region20: #{bootplace_forward.3} parent=11 // pred_fallthru
        _
    $region12: #{bootplace_forward.3} parent=5 // pred_fallthru
      _
    %p140 = scmp.lt.s32.totalorder %s9, 2
    // Predicated region
    $region21: #{bootplace_forward.3} parent=5 // pred_check
      %p141 = pneg %p140
    $region22: #{bootplace_forward.3} parent=5 // pred_check_branch
      %143 = sbr.rel (%p141) target = $region24
    $region23: #{bootplace_forward.3} parent=5 // pred_region
      // Predicated region
      $region25: #{bootplace_forward.3} parent=23 // pred_check
        %p144 = pneg %p43
      $region26: #{bootplace_forward.3} parent=23 // pred_check_branch
        %146 = sbr.rel (%p144) target = $region28
      $region27: #{bootplace_forward.3} parent=23 // pred_region
        %s147 = smul.u32 2, %s17
        %p148 = scmp.lt.s32.totalorder %s16, 1
        %s149 = scalar_select %p148, %s16, 1
        %p150 = scmp.lt.s32.totalorder %s147, 1
        %s151 = scalar_select %p150, %s147, 1
        %s152 = smul.addr %s149, 2
        %s153 = sadd.s32 %s151, %s152
        %s154 = smul.addr %s153, 8
        %s155 = scalar_lea.vmem %s0, %s154
        %s156 = smul.u32 2, %s17
      $region28: #{bootplace_forward.3} parent=23 // pred_fallthru
        _
    $region24: #{bootplace_forward.3} parent=5 // pred_fallthru
      _
    %p157 = scmp.le.s32.totalorder 1, %s9
    %p158 = scmp.lt.s32.totalorder %s9, 3
    %p159 = pnand %p157, %p158
    %p160 = pneg %p159
    // Predicated region
    $region29: #{bootplace_forward.3} parent=5 // pred_check
      _
    $region30: #{bootplace_forward.3} parent=5 // pred_check_branch
      %162 = sbr.rel (%p159) target = $region32
    $region31: #{bootplace_forward.3} parent=5 // pred_region
      %s163 = ssub.s32 %s9, 1
      %s164 = smul.u32 2, %s19
      %p165 = scmp.lt.s32.totalorder %s18, 1
      %s166 = scalar_select %p165, %s18, 1
      %p167 = scmp.lt.s32.totalorder %s164, 1
      %s168 = scalar_select %p167, %s164, 1
      %s169 = smul.addr %s166, 2
      %s170 = sadd.s32 %s168, %s169
      %s171 = smul.addr %s170, 8
      %s172 = scalar_lea.vmem %s0, %s171
      %p173 = pneg %p49
      %p174 = pneg %p46
      %p175 = pneg %p70
      %p176 = pneg %p67
      %p177 = pneg %p91
      %p178 = pneg %p88
      %p179 = pneg %p119
      %p180 = pneg %p116
      %s181 = smul.u32 2, %s19
      %p182 = scmp.lt.s32.totalorder %s18, 1
      %s183 = scalar_select %p182, %s18, 1
      %p184 = scmp.lt.s32.totalorder %s181, 1
      %s185 = scalar_select %p184, %s181, 1
      %s186 = smul.addr %s183, 8
      %s187 = sadd.s32 %s185, %s186
      %s188 = smul.addr %s187, 8
      %s189 = scalar_lea.vmem %s3, %s188
      %s190 = smul.u32 2, %s19
      %p191 = scmp.lt.s32.totalorder %s18, 1
      %s192 = scalar_select %p191, %s18, 1
      %p193 = scmp.lt.s32.totalorder %s190, 1
      %s194 = scalar_select %p193, %s190, 1
      %s195 = smul.addr %s192, 2
      %s196 = sadd.s32 %s194, %s195
      %s197 = smul.addr %s196, 8
      %s198 = scalar_lea.vmem %s0, %s197
      %s199 = smul.u32 2, %s19
      %s200 = smul.u32 2, %s19
      %p201 = scmp.lt.s32.totalorder %s18, 1
      %s202 = scalar_select %p201, %s18, 1
      %p203 = scmp.lt.s32.totalorder %s200, 1
      %s204 = scalar_select %p203, %s200, 1
      %s205 = smul.addr %s202, 8
      %s206 = sadd.s32 %s204, %s205
      %s207 = smul.addr %s206, 8
      %s208 = scalar_lea.vmem %s3, %s207
      %s209 = smul.u32 2, %s19
      %v210 = vld [vmem:[%s1] sm:$0xff]
      %v211 = vld [vmem:[%s1 + $0x8] sm:$0xff]
      %v212 = vld [vmem:[%s1 + $0x10] sm:$0xff]
      %v213 = vld [vmem:[%s1 + $0x18] sm:$0xff]
      %v214 = vld [vmem:[%s198] sm:$0xff]
      %v215 = vld [vmem:[%s198 + $0x8] sm:$0xff]
      %v216 = vld [vmem:[%s2] sm:$0xff]
      %v217 = vld [vmem:[%s2 + $0x8] sm:$0xff]
      %v218 = vld [vmem:[%s2 + $0x10] sm:$0xff]
      %v219 = vld [vmem:[%s2 + $0x18] sm:$0xff]
      %221 = vset.pattern.permute.xlu0 0
      %222 = vperm.xlu0 %221, %v216
      %v223 = vpop.permute.xlu0 %222
      %226 = vset.pattern.permute.xlu0 0
      %227 = vperm.xlu0 %226, %v217
      %v228 = vpop.permute.xlu0 %227
      %231 = vset.pattern.permute.xlu0 0
      %232 = vperm.xlu0 %231, %v218
      %v233 = vpop.permute.xlu0 %232
      %236 = vset.pattern.permute.xlu0 0
      %237 = vperm.xlu0 %236, %v219
      %v238 = vpop.permute.xlu0 %237
      %vm240 = vcmask 64512
      %v242 = vsel %vm240, %v210, 0
      %v245 = vsel %vm240, %v211, 0
      %v248 = vsel %vm240, %v212, 0
      %v251 = vsel %vm240, %v213, 0
      %253 = vmatprep.subr.mxu0 0.0
      %254 = vmatpush1.msra.mxu0 0.0
      %255 = vmatprep.subr.mxu0 0.0
      %256 = vmatpush1.msra.mxu0 0.0
      %257 = vmatprep.subr.mxu0 0.0
      %258 = vmatpush1.msra.mxu0 0.0
      %259 = vmatprep.subr.mxu0 0.0
      %260 = vmatpush1.msra.mxu0 0.0
      %261 = vmatprep.subr.mxu0 0.0
      %262 = vmatpush1.msra.mxu0 0.0
      %263 = vmatprep.subr.mxu0 0.0
      %264 = vmatpush1.msra.mxu0 0.0
      %265 = vmatprep.subr.mxu0 0.0
      %266 = vmatpush1.msra.mxu0 0.0
      %267 = vmatprep.subr.mxu0 0.0
      %268 = vmatpush1.msra.mxu0 0.0
      %269 = vmatprep.subr.mxu0 0.0
      %270 = vmatpush1.msra.mxu0 0.0
      %271 = vmatprep.subr.mxu0 0.0
      %272 = vmatpush1.msra.mxu0 0.0
      %273 = vmatprep.subr.mxu0 0.0
      %274 = vmatpush1.msra.mxu0 0.0
      %275 = vmatprep.subr.mxu0 0.0
      %276 = vmatpush1.msra.mxu0 0.0
      %277 = vmatprep.subr.mxu0 0.0
      %278 = vmatpush1.msra.mxu0 0.0
      %279 = vmatprep.subr.mxu0 0.0
      %280 = vmatpush1.msra.mxu0 0.0
      %281 = vmatprep.subr.mxu0 0.0
      %282 = vmatpush1.msra.mxu0 0.0
      %283 = vmatprep.subr.mxu0 %v215
      %284 = vmatpush1.msra.mxu0 %v214
      %285 = vmatprep.subr.mxu0 0.0
      %286 = vmatpush2.msra.mxu0 0.0
      %287 = vmatprep.subr.mxu0 0.0
      %288 = vmatpush2.msra.mxu0 0.0
      %289 = vmatprep.subr.mxu0 0.0
      %290 = vmatpush2.msra.mxu0 0.0
      %291 = vmatprep.subr.mxu0 0.0
      %292 = vmatpush2.msra.mxu0 0.0
      %293 = vmatprep.subr.mxu0 0.0
      %294 = vmatpush2.msra.mxu0 0.0
      %295 = vmatprep.subr.mxu0 0.0
      %296 = vmatpush2.msra.mxu0 0.0
      %297 = vmatprep.subr.mxu0 0.0
      %298 = vmatpush2.msra.mxu0 0.0
      %299 = vmatprep.subr.mxu0 0.0
      %300 = vmatpush2.msra.mxu0 0.0
      %301 = vmatprep.subr.mxu0 0.0
      %302 = vmatpush2.msra.mxu0 0.0
      %303 = vmatprep.subr.mxu0 0.0
      %304 = vmatpush2.msra.mxu0 0.0
      %305 = vmatprep.subr.mxu0 0.0
      %306 = vmatpush2.msra.mxu0 0.0
      %307 = vmatprep.subr.mxu0 0.0
      %308 = vmatpush2.msra.mxu0 0.0
      %309 = vmatprep.subr.mxu0 0.0
      %310 = vmatpush2.msra.mxu0 0.0
      %311 = vmatprep.subr.mxu0 0.0
      %312 = vmatpush2.msra.mxu0 0.0
      %313 = vmatprep.subr.mxu0 0.0
      %314 = vmatpush2.msra.mxu0 0.0
      %315 = vmatprep.subr.mxu0 0.0
      %316 = vmatpush2.msra.mxu0 0.0
      %317 = vmatprep.mubr.f32.mxu0 0.0
      %318 = vmatmul.mubr.f32.gmra.mxu0 %v242
      %v319 = vpop.f32.mrf.mxu0
      %v320 = vadd.f32 %v223, %v319
      %v321 = vpop.f32.mrf.mxu0
      %v322 = vadd.f32 %v223, %v321
      %323 = vmatprep.mubr.f32.mxu0 0.0
      %324 = vmatmul.mubr.f32.gmra.mxu0 %v245
      %v325 = vpop.f32.mrf.mxu0
      %v326 = vadd.f32 %v228, %v325
      %v327 = vpop.f32.mrf.mxu0
      %v328 = vadd.f32 %v228, %v327
      %329 = vmatprep.mubr.f32.mxu0 0.0
      %330 = vmatmul.mubr.f32.gmra.mxu0 %v248
      %v331 = vpop.f32.mrf.mxu0
      %v332 = vadd.f32 %v233, %v331
      %v333 = vpop.f32.mrf.mxu0
      %v334 = vadd.f32 %v233, %v333
      %335 = vmatprep.mubr.f32.mxu0 0.0
      %336 = vmatmul.mubr.f32.gmra.mxu0 %v251
      %v337 = vpop.f32.mrf.mxu0
      %v338 = vadd.f32 %v238, %v337
      %v339 = vpop.f32.mrf.mxu0
      %v340 = vadd.f32 %v238, %v339
      %341 = vdwg.mxu0
      %342 = vst [vmem:[%s208] sm:$0xff] %v320
      %343 = vst [vmem:[%s208 + $0x8] sm:$0xff] %v322
      %344 = vst [vmem:[%s208 + $0x10] sm:$0xff] %v326
      %345 = vst [vmem:[%s208 + $0x18] sm:$0xff] %v328
      %346 = vst [vmem:[%s208 + $0x20] sm:$0xff] %v332
      %347 = vst [vmem:[%s208 + $0x28] sm:$0xff] %v334
      %348 = vst [vmem:[%s208 + $0x30] sm:$0xff] %v338
      %349 = vst [vmem:[%s208 + $0x38] sm:$0xff] %v340
      %s350 = smul.u32 2, %s19
      %p351 = scmp.lt.s32.totalorder %s18, 1
      %s352 = scalar_select %p351, %s18, 1
      %p353 = scmp.lt.s32.totalorder %s350, 1
      %s354 = scalar_select %p353, %s350, 1
      %s355 = smul.addr %s352, 8
      %s356 = sadd.s32 %s354, %s355
      %s357 = smul.addr %s356, 8
      %s358 = scalar_lea.vmem %s3, %s357
      // Predicated region
      $region33: #{bootplace_forward.3} parent=31 // pred_check
        %p359 = pneg %p116
      $region34: #{bootplace_forward.3} parent=31 // pred_check_branch
        %361 = sbr.rel (%p359) target = $region36
      $region35: #{bootplace_forward.3} parent=31 // pred_region
        %s362 = smul.u32 2, %s19
      $region36: #{bootplace_forward.3} parent=31 // pred_fallthru
        _
    $region32: #{bootplace_forward.3} parent=5 // pred_fallthru
      _
    %p363 = scmp.le.s32.totalorder 2, %s9
    // Predicated region
    $region37: #{bootplace_forward.3} parent=5 // pred_check
      %p364 = pneg %p363
    $region38: #{bootplace_forward.3} parent=5 // pred_check_branch
      %366 = sbr.rel (%p364) target = $region40
    $region39: #{bootplace_forward.3} parent=5 // pred_region
      %s367 = ssub.s32 %s9, 2
      // Predicated region
      $region41: #{bootplace_forward.3} parent=39 // pred_check
        %p368 = pneg %p122
      $region42: #{bootplace_forward.3} parent=39 // pred_check_branch
        %370 = sbr.rel (%p368) target = $region44
      $region43: #{bootplace_forward.3} parent=39 // pred_region
        %s371 = smul.u32 2, %s21
        %p372 = scmp.lt.s32.totalorder %s20, 1
        %s373 = scalar_select %p372, %s20, 1
        %p374 = scmp.lt.s32.totalorder %s371, 1
        %s375 = scalar_select %p374, %s371, 1
        %s376 = smul.addr %s373, 8
        %s377 = sadd.s32 %s375, %s376
        %s378 = smul.addr %s377, 8
        %s379 = scalar_lea.vmem %s3, %s378
      $region44: #{bootplace_forward.3} parent=39 // pred_fallthru
        _
    $region40: #{bootplace_forward.3} parent=5 // pred_fallthru
      _
  $region6: #{bootplace_forward.3} parent=0 // loop_footer
    %s13 = sadd.s32 1, %s9
  $region7: #{bootplace_forward.3} parent=0 // loop_footer_branch
    %8 = sbr.rel target = $region3
  $region8: #{bootplace_forward.3} parent=0 // loop_exit
    _

// kernel: bootplace_forward.4
$region0: #{bootplace_forward.4}
  #allocation0 [shape = 'u32[]', space=smem, size = 0x4, offset = 0x4, fixed_abs, tag = 'smem constant byte address 0x4 - core index']
  #allocation1 [shape = 'u32[144,128]{1,0:T(1,128)}', space=vmem, size = 0x12000, scoped, tag = 'internal scratch']
  %s0 = inlined_call_operand.vmem [shape: f32[32,32], index: 0, kind: input, shape index: {}]
  %s1 = inlined_call_operand.vmem [shape: f32[32,1], index: 1, kind: input, shape index: {}]
  %s2 = inlined_call_operand.vmem [shape: f32[32,160], index: 2, kind: input, shape index: {}]
  %s3 = inlined_call_operand.vmem [shape: f32[1,128], index: 3, kind: input, shape index: {}]
  %s4 = inlined_call_operand.vmem [shape: f32[1,32], index: 4, kind: input, shape index: {}]
  %s5 = inlined_call_operand.vmem [shape: f32[32,32], index: 5, kind: input, shape index: {}]
  %s6 = inlined_call_operand.vmem [shape: f32[1,32], index: 6, kind: input, shape index: {}]
  %s7 = inlined_call_operand.vmem [shape: f32[32,128], index: 7, kind: input, shape index: {}]
  %s8 = inlined_call_operand.vmem [shape: f32[1,128], index: 8, kind: input, shape index: {}]
  %s9 = inlined_call_operand.vmem [shape: f32[32,128], index: 9, kind: output, shape index: {0}]
  %s10 = inlined_call_operand.vmem [shape: f32[32,128], index: 10, kind: output, shape index: {1}]
  %11 = xla_tuple %s9, %s10
  %s12 = sld [smem:[#allocation0]]
  $region54: #{bootplace_forward.4} parent=0
    _
  %s14 = ssub.s32 1, %s12
  %s15 = scalar_select 0, %s14, %s12
  // Predicated region
  $region2: #{bootplace_forward.4} parent=0 // pred_check
    _
  $region3: #{bootplace_forward.4} parent=0 // pred_check_branch
    %17 = sbr.rel (0) target = $region5
  $region4: #{bootplace_forward.4} parent=0 // pred_region
    _
  $region5: #{bootplace_forward.4} parent=0 // pred_fallthru
    _
  // Predicated region
  $region6: #{bootplace_forward.4} parent=0 // pred_check
    _
  $region7: #{bootplace_forward.4} parent=0 // pred_check_branch
    %19 = sbr.rel (0) target = $region9
  $region8: #{bootplace_forward.4} parent=0 // pred_region
    _
  $region9: #{bootplace_forward.4} parent=0 // pred_fallthru
    _
  // Predicated region
  $region10: #{bootplace_forward.4} parent=0 // pred_check
    _
  $region11: #{bootplace_forward.4} parent=0 // pred_check_branch
    %21 = sbr.rel (0) target = $region13
  $region12: #{bootplace_forward.4} parent=0 // pred_region
    _
  $region13: #{bootplace_forward.4} parent=0 // pred_fallthru
    _
  // Predicated region
  $region14: #{bootplace_forward.4} parent=0 // pred_check
    _
  $region15: #{bootplace_forward.4} parent=0 // pred_check_branch
    %23 = sbr.rel (0) target = $region17
  $region16: #{bootplace_forward.4} parent=0 // pred_region
    _
  $region17: #{bootplace_forward.4} parent=0 // pred_fallthru
    _
  // Predicated region
  $region18: #{bootplace_forward.4} parent=0 // pred_check
    _
  $region19: #{bootplace_forward.4} parent=0 // pred_check_branch
    %25 = sbr.rel (0) target = $region21
  $region20: #{bootplace_forward.4} parent=0 // pred_region
    _
  $region21: #{bootplace_forward.4} parent=0 // pred_fallthru
    _
  // Predicated region
  $region22: #{bootplace_forward.4} parent=0 // pred_check
    _
  $region23: #{bootplace_forward.4} parent=0 // pred_check_branch
    %27 = sbr.rel (0) target = $region25
  $region24: #{bootplace_forward.4} parent=0 // pred_region
    _
  $region25: #{bootplace_forward.4} parent=0 // pred_fallthru
    _
  // Predicated region
  $region26: #{bootplace_forward.4} parent=0 // pred_check
    _
  $region27: #{bootplace_forward.4} parent=0 // pred_check_branch
    %29 = sbr.rel (0) target = $region29
  $region28: #{bootplace_forward.4} parent=0 // pred_region
    _
  $region29: #{bootplace_forward.4} parent=0 // pred_fallthru
    _
  // Predicated region
  $region30: #{bootplace_forward.4} parent=0 // pred_check
    _
  $region31: #{bootplace_forward.4} parent=0 // pred_check_branch
    %31 = sbr.rel (0) target = $region33
  $region32: #{bootplace_forward.4} parent=0 // pred_region
    _
  $region33: #{bootplace_forward.4} parent=0 // pred_fallthru
    _
  // Predicated region
  $region34: #{bootplace_forward.4} parent=0 // pred_check
    _
  $region35: #{bootplace_forward.4} parent=0 // pred_check_branch
    %33 = sbr.rel (0) target = $region37
  $region36: #{bootplace_forward.4} parent=0 // pred_region
    _
  $region37: #{bootplace_forward.4} parent=0 // pred_fallthru
    _
  %v34 = vld [vmem:[%s0] sm:$0xff]
  %v35 = vld [vmem:[%s0 + $0x8] sm:$0xff]
  %v36 = vld [vmem:[%s0 + $0x10] sm:$0xff]
  %v37 = vld [vmem:[%s0 + $0x18] sm:$0xff]
  %v38 = vld [vmem:[%s2] sm:$0xff]
  %v39 = vld [vmem:[%s2 + $0x8] sm:$0xff]
  %v40 = vld [vmem:[%s2 + $0x10] sm:$0xff]
  %v41 = vld [vmem:[%s2 + $0x18] sm:$0xff]
  %v42 = vld [vmem:[%s2 + $0x20] sm:$0xff]
  %v43 = vld [vmem:[%s2 + $0x28] sm:$0xff]
  %v44 = vld [vmem:[%s2 + $0x30] sm:$0xff]
  %v45 = vld [vmem:[%s2 + $0x38] sm:$0xff]
  %vm46 = vcmask 261120
  %v48 = vsel %vm46, %v34, 0
  %v51 = vsel %vm46, %v35, 0
  %v54 = vsel %vm46, %v36, 0
  %v57 = vsel %vm46, %v37, 0
  %59 = vmatprep.subr.mxu0 0.0
  %60 = vmatpush1.msra.mxu0 0.0
  %61 = vmatprep.subr.mxu0 0.0
  %62 = vmatpush1.msra.mxu0 0.0
  %63 = vmatprep.subr.mxu0 0.0
  %64 = vmatpush1.msra.mxu0 0.0
  %65 = vmatprep.subr.mxu0 0.0
  %66 = vmatpush1.msra.mxu0 0.0
  %67 = vmatprep.subr.mxu0 0.0
  %68 = vmatpush1.msra.mxu0 0.0
  %69 = vmatprep.subr.mxu0 0.0
  %70 = vmatpush1.msra.mxu0 0.0
  %71 = vmatprep.subr.mxu0 0.0
  %72 = vmatpush1.msra.mxu0 0.0
  %73 = vmatprep.subr.mxu0 0.0
  %74 = vmatpush1.msra.mxu0 0.0
  %75 = vmatprep.subr.mxu0 0.0
  %76 = vmatpush1.msra.mxu0 0.0
  %77 = vmatprep.subr.mxu0 0.0
  %78 = vmatpush1.msra.mxu0 0.0
  %79 = vmatprep.subr.mxu0 0.0
  %80 = vmatpush1.msra.mxu0 0.0
  %81 = vmatprep.subr.mxu0 0.0
  %82 = vmatpush1.msra.mxu0 0.0
  %83 = vmatprep.subr.mxu0 %v45
  %84 = vmatpush1.msra.mxu0 %v44
  %85 = vmatprep.subr.mxu0 %v43
  %86 = vmatpush1.msra.mxu0 %v42
  %87 = vmatprep.subr.mxu0 %v41
  %88 = vmatpush1.msra.mxu0 %v40
  %89 = vmatprep.subr.mxu0 %v39
  %90 = vmatpush1.msra.mxu0 %v38
  %91 = vmatprep.subr.mxu0 0.0
  %92 = vmatpush2.msra.mxu0 0.0
  %93 = vmatprep.subr.mxu0 0.0
  %94 = vmatpush2.msra.mxu0 0.0
  %95 = vmatprep.subr.mxu0 0.0
  %96 = vmatpush2.msra.mxu0 0.0
  %97 = vmatprep.subr.mxu0 0.0
  %98 = vmatpush2.msra.mxu0 0.0
  %99 = vmatprep.subr.mxu0 0.0
  %100 = vmatpush2.msra.mxu0 0.0
  %101 = vmatprep.subr.mxu0 0.0
  %102 = vmatpush2.msra.mxu0 0.0
  %103 = vmatprep.subr.mxu0 0.0
  %104 = vmatpush2.msra.mxu0 0.0
  %105 = vmatprep.subr.mxu0 0.0
  %106 = vmatpush2.msra.mxu0 0.0
  %107 = vmatprep.subr.mxu0 0.0
  %108 = vmatpush2.msra.mxu0 0.0
  %109 = vmatprep.subr.mxu0 0.0
  %110 = vmatpush2.msra.mxu0 0.0
  %111 = vmatprep.subr.mxu0 0.0
  %112 = vmatpush2.msra.mxu0 0.0
  %113 = vmatprep.subr.mxu0 0.0
  %114 = vmatpush2.msra.mxu0 0.0
  %115 = vmatprep.subr.mxu0 0.0
  %116 = vmatpush2.msra.mxu0 0.0
  %117 = vmatprep.subr.mxu0 0.0
  %118 = vmatpush2.msra.mxu0 0.0
  %119 = vmatprep.subr.mxu0 0.0
  %120 = vmatpush2.msra.mxu0 0.0
  %121 = vmatprep.subr.mxu0 0.0
  %122 = vmatpush2.msra.mxu0 0.0
  %123 = vmatprep.mubr.f32.mxu0 0.0
  %124 = vmatmul.mubr.f32.gmra.mxu0 %v48
  %v125 = vpop.f32.mrf.mxu0
  %v126 = vadd.f32 0.0, %v125
  %v127 = vpop.f32.mrf.mxu0
  %v128 = vadd.f32 0.0, %v127
  %129 = vmatprep.mubr.f32.mxu0 0.0
  %130 = vmatmul.mubr.f32.gmra.mxu0 %v51
  %v131 = vpop.f32.mrf.mxu0
  %v132 = vadd.f32 0.0, %v131
  %v133 = vpop.f32.mrf.mxu0
  %v134 = vadd.f32 0.0, %v133
  %135 = vmatprep.mubr.f32.mxu0 0.0
  %136 = vmatmul.mubr.f32.gmra.mxu0 %v54
  %v137 = vpop.f32.mrf.mxu0
  %v138 = vadd.f32 0.0, %v137
  %v139 = vpop.f32.mrf.mxu0
  %v140 = vadd.f32 0.0, %v139
  %141 = vmatprep.mubr.f32.mxu0 0.0
  %142 = vmatmul.mubr.f32.gmra.mxu0 %v57
  %v143 = vpop.f32.mrf.mxu0
  %v144 = vadd.f32 0.0, %v143
  %v145 = vpop.f32.mrf.mxu0
  %v146 = vadd.f32 0.0, %v145
  %147 = vdwg.mxu0
  %v148 = vld [vmem:[%s3] sm:$0x1]
  %v150 = vlaneseq
  %v151 = vshrl.u32 %v150, 7
  %v152 = vsub.s32 0, %v151
  %v153 = vrot.slane %v148, %v152
  %v155 = vadd.f32 %v126, %v153
  %v156 = vadd.f32 %v132, %v153
  %v157 = vadd.f32 %v138, %v153
  %v158 = vadd.f32 %v144, %v153
  %159 = vst [vmem:[%s9] sm:$0xff] %v155
  %160 = vst [vmem:[%s9 + $0x8] sm:$0xff] %v156
  %161 = vst [vmem:[%s9 + $0x10] sm:$0xff] %v157
  %162 = vst [vmem:[%s9 + $0x18] sm:$0xff] %v158
  %v163 = vld [vmem:[%s1] sm:$0xff]
  %v164 = vld [vmem:[%s1 + $0x8] sm:$0xff]
  %v165 = vld [vmem:[%s1 + $0x10] sm:$0xff]
  %v166 = vld [vmem:[%s1 + $0x18] sm:$0xff]
  %168 = vset.pattern.permute.xlu0 0
  %169 = vperm.xlu0 %168, %v163
  %v170 = vpop.permute.xlu0 %169
  %173 = vset.pattern.permute.xlu0 0
  %174 = vperm.xlu0 %173, %v164
  %v175 = vpop.permute.xlu0 %174
  %178 = vset.pattern.permute.xlu0 0
  %179 = vperm.xlu0 %178, %v165
  %v180 = vpop.permute.xlu0 %179
  %183 = vset.pattern.permute.xlu0 0
  %184 = vperm.xlu0 %183, %v166
  %v185 = vpop.permute.xlu0 %184
  %v187 = vmul.f32 %v170, %v128
  %v188 = vmul.f32 %v175, %v134
  %v189 = vmul.f32 %v180, %v140
  %v190 = vmul.f32 %v185, %v146
  %v191 = vld [vmem:[%s4] sm:$0x1]
  %v193 = vlaneseq
  %v194 = vshrl.u32 %v193, 7
  %v195 = vsub.s32 0, %v194
  %v196 = vrot.slane %v191, %v195
  %v198 = vadd.f32 %v187, %v196
  %v199 = vadd.f32 %v188, %v196
  %v200 = vadd.f32 %v189, %v196
  %v201 = vadd.f32 %v190, %v196
  %v202 = vmax.f32 %v198, 0.0
  %v203 = vmax.f32 %v199, 0.0
  %v204 = vmax.f32 %v200, 0.0
  %v205 = vmax.f32 %v201, 0.0
  %v206 = vld [vmem:[%s5] sm:$0xff]
  %v207 = vld [vmem:[%s5 + $0x8] sm:$0xff]
  %v208 = vld [vmem:[%s5 + $0x10] sm:$0xff]
  %v209 = vld [vmem:[%s5 + $0x18] sm:$0xff]
  %v210 = vld [vmem:[%s6] sm:$0x1]
  %v212 = vlaneseq
  %v213 = vshrl.u32 %v212, 7
  %v214 = vsub.s32 0, %v213
  %v215 = vrot.slane %v210, %v214
  %v218 = vsel %vm46, %v202, 0
  %v221 = vsel %vm46, %v203, 0
  %v224 = vsel %vm46, %v204, 0
  %v227 = vsel %vm46, %v205, 0
  %229 = vmatprep.subr.mxu0 0.0
  %230 = vmatpush1.msra.mxu0 0.0
  %231 = vmatprep.subr.mxu0 0.0
  %232 = vmatpush1.msra.mxu0 0.0
  %233 = vmatprep.subr.mxu0 0.0
  %234 = vmatpush1.msra.mxu0 0.0
  %235 = vmatprep.subr.mxu0 0.0
  %236 = vmatpush1.msra.mxu0 0.0
  %237 = vmatprep.subr.mxu0 0.0
  %238 = vmatpush1.msra.mxu0 0.0
  %239 = vmatprep.subr.mxu0 0.0
  %240 = vmatpush1.msra.mxu0 0.0
  %241 = vmatprep.subr.mxu0 0.0
  %242 = vmatpush1.msra.mxu0 0.0
  %243 = vmatprep.subr.mxu0 0.0
  %244 = vmatpush1.msra.mxu0 0.0
  %245 = vmatprep.subr.mxu0 0.0
  %246 = vmatpush1.msra.mxu0 0.0
  %247 = vmatprep.subr.mxu0 0.0
  %248 = vmatpush1.msra.mxu0 0.0
  %249 = vmatprep.subr.mxu0 0.0
  %250 = vmatpush1.msra.mxu0 0.0
  %251 = vmatprep.subr.mxu0 0.0
  %252 = vmatpush1.msra.mxu0 0.0
  %253 = vmatprep.subr.mxu0 0.0
  %254 = vmatpush1.msra.mxu0 %v209
  %255 = vmatprep.subr.mxu0 0.0
  %256 = vmatpush1.msra.mxu0 %v208
  %257 = vmatprep.subr.mxu0 0.0
  %258 = vmatpush1.msra.mxu0 %v207
  %259 = vmatprep.subr.mxu0 0.0
  %260 = vmatpush1.msra.mxu0 %v206
  %261 = vmatprep.subr.mxu0 0.0
  %262 = vmatpush2.msra.mxu0 0.0
  %263 = vmatprep.subr.mxu0 0.0
  %264 = vmatpush2.msra.mxu0 0.0
  %265 = vmatprep.subr.mxu0 0.0
  %266 = vmatpush2.msra.mxu0 0.0
  %267 = vmatprep.subr.mxu0 0.0
  %268 = vmatpush2.msra.mxu0 0.0
  %269 = vmatprep.subr.mxu0 0.0
  %270 = vmatpush2.msra.mxu0 0.0
  %271 = vmatprep.subr.mxu0 0.0
  %272 = vmatpush2.msra.mxu0 0.0
  %273 = vmatprep.subr.mxu0 0.0
  %274 = vmatpush2.msra.mxu0 0.0
  %275 = vmatprep.subr.mxu0 0.0
  %276 = vmatpush2.msra.mxu0 0.0
  %277 = vmatprep.subr.mxu0 0.0
  %278 = vmatpush2.msra.mxu0 0.0
  %279 = vmatprep.subr.mxu0 0.0
  %280 = vmatpush2.msra.mxu0 0.0
  %281 = vmatprep.subr.mxu0 0.0
  %282 = vmatpush2.msra.mxu0 0.0
  %283 = vmatprep.subr.mxu0 0.0
  %284 = vmatpush2.msra.mxu0 0.0
  %285 = vmatprep.subr.mxu0 0.0
  %286 = vmatpush2.msra.mxu0 0.0
  %287 = vmatprep.subr.mxu0 0.0
  %288 = vmatpush2.msra.mxu0 0.0
  %289 = vmatprep.subr.mxu0 0.0
  %290 = vmatpush2.msra.mxu0 0.0
  %291 = vmatprep.subr.mxu0 0.0
  %292 = vmatpush2.msra.mxu0 0.0
  %293 = vmatprep.mubr.f32.mxu0 0.0
  %294 = vmatmul.mubr.f32.gmra.mxu0 %v218
  %v295 = vpop.f32.mrf.mxu0
  %v296 = vadd.f32 %v215, %v295
  %v297 = vpop.f32.mrf.mxu0
  %298 = vmatprep.mubr.f32.mxu0 0.0
  %299 = vmatmul.mubr.f32.gmra.mxu0 %v221
  %v300 = vpop.f32.mrf.mxu0
  %v301 = vadd.f32 %v215, %v300
  %v302 = vpop.f32.mrf.mxu0
  %303 = vmatprep.mubr.f32.mxu0 0.0
  %304 = vmatmul.mubr.f32.gmra.mxu0 %v224
  %v305 = vpop.f32.mrf.mxu0
  %v306 = vadd.f32 %v215, %v305
  %v307 = vpop.f32.mrf.mxu0
  %308 = vmatprep.mubr.f32.mxu0 0.0
  %309 = vmatmul.mubr.f32.gmra.mxu0 %v227
  %v310 = vpop.f32.mrf.mxu0
  %v311 = vadd.f32 %v215, %v310
  %v312 = vpop.f32.mrf.mxu0
  %313 = vdwg.mxu0
  %v314 = vmax.f32 %v296, 0.0
  %v315 = vmax.f32 %v301, 0.0
  %v316 = vmax.f32 %v306, 0.0
  %v317 = vmax.f32 %v311, 0.0
  %v318 = vld [vmem:[%s7] sm:$0xff]
  %v319 = vld [vmem:[%s7 + $0x8] sm:$0xff]
  %v320 = vld [vmem:[%s7 + $0x10] sm:$0xff]
  %v321 = vld [vmem:[%s7 + $0x18] sm:$0xff]
  %v322 = vld [vmem:[%s8] sm:$0x1]
  %v324 = vlaneseq
  %v325 = vshrl.u32 %v324, 7
  %v326 = vsub.s32 0, %v325
  %v327 = vrot.slane %v322, %v326
  %v330 = vsel %vm46, %v314, 0
  %v333 = vsel %vm46, %v315, 0
  %v336 = vsel %vm46, %v316, 0
  %v339 = vsel %vm46, %v317, 0
  %341 = vmatprep.subr.mxu0 0.0
  %342 = vmatpush1.msra.mxu0 0.0
  %343 = vmatprep.subr.mxu0 0.0
  %344 = vmatpush1.msra.mxu0 0.0
  %345 = vmatprep.subr.mxu0 0.0
  %346 = vmatpush1.msra.mxu0 0.0
  %347 = vmatprep.subr.mxu0 0.0
  %348 = vmatpush1.msra.mxu0 0.0
  %349 = vmatprep.subr.mxu0 0.0
  %350 = vmatpush1.msra.mxu0 0.0
  %351 = vmatprep.subr.mxu0 0.0
  %352 = vmatpush1.msra.mxu0 0.0
  %353 = vmatprep.subr.mxu0 0.0
  %354 = vmatpush1.msra.mxu0 0.0
  %355 = vmatprep.subr.mxu0 0.0
  %356 = vmatpush1.msra.mxu0 0.0
  %357 = vmatprep.subr.mxu0 0.0
  %358 = vmatpush1.msra.mxu0 0.0
  %359 = vmatprep.subr.mxu0 0.0
  %360 = vmatpush1.msra.mxu0 0.0
  %361 = vmatprep.subr.mxu0 0.0
  %362 = vmatpush1.msra.mxu0 0.0
  %363 = vmatprep.subr.mxu0 0.0
  %364 = vmatpush1.msra.mxu0 0.0
  %365 = vmatprep.subr.mxu0 0.0
  %366 = vmatpush1.msra.mxu0 %v321
  %367 = vmatprep.subr.mxu0 0.0
  %368 = vmatpush1.msra.mxu0 %v320
  %369 = vmatprep.subr.mxu0 0.0
  %370 = vmatpush1.msra.mxu0 %v319
  %371 = vmatprep.subr.mxu0 0.0
  %372 = vmatpush1.msra.mxu0 %v318
  %373 = vmatprep.subr.mxu0 0.0
  %374 = vmatpush2.msra.mxu0 0.0
  %375 = vmatprep.subr.mxu0 0.0
  %376 = vmatpush2.msra.mxu0 0.0
  %377 = vmatprep.subr.mxu0 0.0
  %378 = vmatpush2.msra.mxu0 0.0
  %379 = vmatprep.subr.mxu0 0.0
  %380 = vmatpush2.msra.mxu0 0.0
  %381 = vmatprep.subr.mxu0 0.0
  %382 = vmatpush2.msra.mxu0 0.0
  %383 = vmatprep.subr.mxu0 0.0
  %384 = vmatpush2.msra.mxu0 0.0
  %385 = vmatprep.subr.mxu0 0.0
  %386 = vmatpush2.msra.mxu0 0.0
  %387 = vmatprep.subr.mxu0 0.0
  %388 = vmatpush2.msra.mxu0 0.0
  %389 = vmatprep.subr.mxu0 0.0
  %390 = vmatpush2.msra.mxu0 0.0
  %391 = vmatprep.subr.mxu0 0.0
  %392 = vmatpush2.msra.mxu0 0.0
  %393 = vmatprep.subr.mxu0 0.0
  %394 = vmatpush2.msra.mxu0 0.0
  %395 = vmatprep.subr.mxu0 0.0
  %396 = vmatpush2.msra.mxu0 0.0
  %397 = vmatprep.subr.mxu0 0.0
  %398 = vmatpush2.msra.mxu0 0.0
  %399 = vmatprep.subr.mxu0 0.0
  %400 = vmatpush2.msra.mxu0 0.0
  %401 = vmatprep.subr.mxu0 0.0
  %402 = vmatpush2.msra.mxu0 0.0
  %403 = vmatprep.subr.mxu0 0.0
  %404 = vmatpush2.msra.mxu0 0.0
  %405 = vmatprep.mubr.f32.mxu0 0.0
  %406 = vmatmul.mubr.f32.gmra.mxu0 %v330
  %v407 = vpop.f32.mrf.mxu0
  %v408 = vadd.f32 %v327, %v407
  %v409 = vpop.f32.mrf.mxu0
  %410 = vmatprep.mubr.f32.mxu0 0.0
  %411 = vmatmul.mubr.f32.gmra.mxu0 %v333
  %v412 = vpop.f32.mrf.mxu0
  %v413 = vadd.f32 %v327, %v412
  %v414 = vpop.f32.mrf.mxu0
  %415 = vmatprep.mubr.f32.mxu0 0.0
  %416 = vmatmul.mubr.f32.gmra.mxu0 %v336
  %v417 = vpop.f32.mrf.mxu0
  %v418 = vadd.f32 %v327, %v417
  %v419 = vpop.f32.mrf.mxu0
  %420 = vmatprep.mubr.f32.mxu0 0.0
  %421 = vmatmul.mubr.f32.gmra.mxu0 %v339
  %v422 = vpop.f32.mrf.mxu0
  %v423 = vadd.f32 %v327, %v422
  %v424 = vpop.f32.mrf.mxu0
  %425 = vdwg.mxu0
  %v426 = vxor.u32 %v408, 2147483648
  %v427 = vxor.u32 %v413, 2147483648
  %v428 = vxor.u32 %v418, 2147483648
  %v429 = vxor.u32 %v423, 2147483648
  %v430 = vmul.f32 %v426, 1.442695
  %v431 = vpow.pop %v430
  %v432 = vmul.f32 %v427, 1.442695
  %v433 = vpow.pop %v432
  %v434 = vmul.f32 %v428, 1.442695
  %v435 = vpow.pop %v434
  %v436 = vmul.f32 %v429, 1.442695
  %v437 = vpow.pop %v436
  %v438 = vadd.f32 %v431, 1.0
  %v439 = vadd.f32 %v433, 1.0
  %v440 = vadd.f32 %v435, 1.0
  %v441 = vadd.f32 %v437, 1.0
  %v442 = vrcp.pop %v438
  %v443 = vmul.f32 1.0, %v442
  %v444 = vrcp.pop %v439
  %v445 = vmul.f32 1.0, %v444
  %v446 = vrcp.pop %v440
  %v447 = vmul.f32 1.0, %v446
  %v448 = vrcp.pop %v441
  %v449 = vmul.f32 1.0, %v448
  %450 = vst [vmem:[%s10] sm:$0xff] %v443
  %451 = vst [vmem:[%s10 + $0x8] sm:$0xff] %v445
  %452 = vst [vmem:[%s10 + $0x10] sm:$0xff] %v447
  %453 = vst [vmem:[%s10 + $0x18] sm:$0xff] %v449
  // Predicated region
  $region38: #{bootplace_forward.4} parent=0 // pred_check
    _
  $region39: #{bootplace_forward.4} parent=0 // pred_check_branch
    %455 = sbr.rel (0) target = $region41
  $region40: #{bootplace_forward.4} parent=0 // pred_region
    _
  $region41: #{bootplace_forward.4} parent=0 // pred_fallthru
    _
  // Predicated region
  $region42: #{bootplace_forward.4} parent=0 // pred_check
    _
  $region43: #{bootplace_forward.4} parent=0 // pred_check_branch
    %457 = sbr.rel (0) target = $region45
  $region44: #{bootplace_forward.4} parent=0 // pred_region
    _
  $region45: #{bootplace_forward.4} parent=0 // pred_fallthru
    _
  // Predicated region
  $region46: #{bootplace_forward.4} parent=0 // pred_check
    _
  $region47: #{bootplace_forward.4} parent=0 // pred_check_branch
    %459 = sbr.rel (0) target = $region49
  $region48: #{bootplace_forward.4} parent=0 // pred_region
    _
  $region49: #{bootplace_forward.4} parent=0 // pred_fallthru
    _
  // Predicated region
  $region50: #{bootplace_forward.4} parent=0 // pred_check
    _
  $region51: #{bootplace_forward.4} parent=0 // pred_check_branch
    %461 = sbr.rel (0) target = $region53
  $region52: #{bootplace_forward.4} parent=0 // pred_region
    _
  $region53: #{bootplace_forward.4} parent=0 // pred_fallthru
    _

</llo_original>
